<compile_context>
chip_gen: v7x
topology: tpu7x:2x2x1
jax: 0.10.0
libtpu: 0.0.40
codegen_flags: <defaults>
</compile_context>

<pallas_src>
import functools
import math

import jax
import jax.numpy as jnp
from jax.experimental import pallas as pl
from jax.experimental.pallas import tpu as pltpu


# ---------------------------------------------------------------------------
# small helpers
# ---------------------------------------------------------------------------
def _round_up(x, m):
    return ((x + m - 1) // m) * m


def _pad2d(a, rows, cols):
    return jnp.pad(a, ((0, rows - a.shape[0]), (0, cols - a.shape[1])))


def _pad_row(v, cols):
    return jnp.pad(v, (0, cols - v.shape[0])).reshape(1, cols)


# ---------------------------------------------------------------------------
# Kernel A: fused GIN layer
#   acc  = sum_k A_hat[:, k] @ z[k, :]              (K-loop on the grid)
#   out  = PReLU(ReLU(acc @ W1 + b1) @ W2 + b2)     (epilogue at last K step)
#   [opt] out = out * bn_scale + bn_shift           (fused encoder BatchNorm)
# ---------------------------------------------------------------------------
def _gin_layer_kernel(a_ref, z_ref, w1_ref, b1_ref, w2_ref, b2_ref,
                      scale_ref, shift_ref, alpha_ref, o_ref, acc_ref,
                      *, apply_bn):
    k = pl.program_id(1)

    @pl.when(k == 0)
    def _():
        acc_ref[...] = jnp.zeros_like(acc_ref)

    # sum-aggregation over neighbours (dense adjacency tile on the MXU)
    acc_ref[...] += jnp.dot(a_ref[...], z_ref[...],
                            preferred_element_type=jnp.float32)

    # MLP + PReLU (+ optional BatchNorm affine) only once, at the final K step
    @pl.when(k == pl.num_programs(1) - 1)
    def _():
        h = jnp.dot(acc_ref[...], w1_ref[...],
                    preferred_element_type=jnp.float32) + b1_ref[...]
        h = jnp.maximum(h, 0.0)
        y = jnp.dot(h, w2_ref[...],
                    preferred_element_type=jnp.float32) + b2_ref[...]
        alpha = alpha_ref[0]
        y = jnp.where(y >= 0.0, y, alpha * y)
        if apply_bn:
            y = y * scale_ref[...] + shift_ref[...]
        o_ref[...] = y.astype(o_ref.dtype)


def gin_layer(a_hat_p, z_p, w1_p, b1_p, w2_p, b2_p, scale_p, shift_p, alpha,
              *, apply_bn, tm=128, tk=128):
    """All operands already zero-padded to 128-aligned shapes."""
    Np = a_hat_p.shape[0]
    Din = z_p.shape[1]
    H = w1_p.shape[1]
    grid = (Np // tm, Np // tk)
    return pl.pallas_call(
        functools.partial(_gin_layer_kernel, apply_bn=apply_bn),
        out_shape=jax.ShapeDtypeStruct((Np, H), jnp.float32),
        grid=grid,
        in_specs=[
            pl.BlockSpec((tm, tk), lambda i, k: (i, k)),        # A_hat tile
            pl.BlockSpec((tk, Din), lambda i, k: (k, 0)),       # z K-tile
            pl.BlockSpec((Din, H), lambda i, k: (0, 0)),        # W1 (VMEM-resident)
            pl.BlockSpec((1, H), lambda i, k: (0, 0)),          # b1
            pl.BlockSpec((H, H), lambda i, k: (0, 0)),          # W2 (VMEM-resident)
            pl.BlockSpec((1, H), lambda i, k: (0, 0)),          # b2
            pl.BlockSpec((1, H), lambda i, k: (0, 0)),          # bn scale
            pl.BlockSpec((1, H), lambda i, k: (0, 0)),          # bn shift
            pl.BlockSpec(memory_space=pltpu.MemorySpace.SMEM),  # PReLU alpha
        ],
        out_specs=pl.BlockSpec((tm, H), lambda i, k: (i, 0)),
        scratch_shapes=[pltpu.VMEM((tm, Din), jnp.float32)],
        compiler_params=pltpu.CompilerParams(
            dimension_semantics=("parallel", "arbitrary")),
        cost_estimate=pl.CostEstimate(
            flops=2 * Np * Np * Din + 2 * Np * Din * H + 2 * Np * H * H,
            transcendentals=0,
            bytes_accessed=4 * (Np * Np + Np * Din + Din * H
                                + H * H + 4 * H + Np * H)),
    )(a_hat_p, z_p, w1_p, b1_p, w2_p, b2_p, scale_p, shift_p, alpha)


# ---------------------------------------------------------------------------
# Kernel B: projection head  p = PReLU(z @ W' + b')   (BatchNorm pre-folded)
# ---------------------------------------------------------------------------
def _linear_prelu_kernel(x_ref, w_ref, b_ref, alpha_ref, o_ref):
    y = jnp.dot(x_ref[...], w_ref[...],
                preferred_element_type=jnp.float32) + b_ref[...]
    alpha = alpha_ref[0]
    y = jnp.where(y >= 0.0, y, alpha * y)
    o_ref[...] = y.astype(o_ref.dtype)


def linear_prelu(x_p, w_p, b_p, alpha, *, tm=128):
    Np, K = x_p.shape
    H = w_p.shape[1]
    return pl.pallas_call(
        _linear_prelu_kernel,
        out_shape=jax.ShapeDtypeStruct((Np, H), jnp.float32),
        grid=(Np // tm,),
        in_specs=[
            pl.BlockSpec((tm, K), lambda i: (i, 0)),
            pl.BlockSpec((K, H), lambda i: (0, 0)),
            pl.BlockSpec((1, H), lambda i: (0, 0)),
            pl.BlockSpec(memory_space=pltpu.MemorySpace.SMEM),
        ],
        out_specs=pl.BlockSpec((tm, H), lambda i: (i, 0)),
        compiler_params=pltpu.CompilerParams(
            dimension_semantics=("parallel",)),
    )(x_p, w_p, b_p, alpha)


# ---------------------------------------------------------------------------
# parameters (deterministic, mirror PyTorch defaults; weights stored (in, out))
# ---------------------------------------------------------------------------
def _init_linear(key, fan_in, fan_out):
    kw, kb = jax.random.split(key)
    bound = 1.0 / math.sqrt(fan_in)          # nn.Linear default bounds
    w = jax.random.uniform(kw, (fan_in, fan_out), jnp.float32, -bound, bound)
    b = jax.random.uniform(kb, (fan_out,), jnp.float32, -bound, bound)
    return w, b


def init_gconv_params(key, input_dim, hidden_dim, num_layers):
    params = {"gin": []}
    dims_in = [input_dim] + [hidden_dim] * (num_layers - 1)
    keys = jax.random.split(key, 2 * num_layers + 1)
    for l, d_in in enumerate(dims_in):
        w1, b1 = _init_linear(keys[2 * l], d_in, hidden_dim)
        w2, b2 = _init_linear(keys[2 * l + 1], hidden_dim, hidden_dim)
        params["gin"].append((w1, b1, w2, b2))
    params["proj_w"], params["proj_b"] = _init_linear(keys[-1], hidden_dim, hidden_dim)
    # PReLU default single parameter = 0.25
    params["act_alpha"] = jnp.float32(0.25)
    params["proj_alpha"] = jnp.float32(0.25)
    # BatchNorm1d, inference mode: gamma=1, beta=0, running stats (0, 1)
    eps = 1e-5
    for name in ("enc", "proj"):
        gamma = jnp.ones((hidden_dim,), jnp.float32)
        beta = jnp.zeros((hidden_dim,), jnp.float32)
        mean = jnp.zeros((hidden_dim,), jnp.float32)
        var = jnp.ones((hidden_dim,), jnp.float32)
        scale = gamma / jnp.sqrt(var + eps)
        shift = beta - mean * scale
        params[f"{name}_bn_scale"] = scale
        params[f"{name}_bn_shift"] = shift
    return params


# ---------------------------------------------------------------------------
# GConv forward (inference)
# ---------------------------------------------------------------------------
def gconv_forward(x, edge_index, params, *, num_nodes, edge_weight=None,
                  eps=0.0, tm=128, tk=128):
    N = num_nodes
    H = params["gin"][0][0].shape[1]
    Np = _round_up(N, max(tm, tk))
    Hp = _round_up(H, 128)

    # TODO(synk): the sparse scatter-add over edge_index has no clean BlockSpec
    # expression; the adjacency is built once (already at padded size) with a
    # plain-JAX scatter and the GIN sum-aggregation runs as a dense adjacency
    # matmul fused into the per-layer kernel.
    src, dst = edge_index[0], edge_index[1]
    ew = (jnp.ones(src.shape, jnp.float32) if edge_weight is None
          else edge_weight.astype(jnp.float32))
    a_hat = jnp.zeros((Np, Np), jnp.float32).at[dst, src].add(ew)
    node_ids = jnp.arange(N)
    a_hat = a_hat.at[node_ids, node_ids].add(1.0 + eps)

    alpha_enc = jnp.asarray(params["act_alpha"], jnp.float32).reshape(1)
    alpha_proj = jnp.asarray(params["proj_alpha"], jnp.float32).reshape(1)
    enc_scale = _pad_row(params["enc_bn_scale"], Hp)
    enc_shift = _pad_row(params["enc_bn_shift"], Hp)

    # pad node features once; everything stays padded until the final slice
    z = _pad2d(x.astype(jnp.float32), Np, _round_up(x.shape[1], 128))

    n_layers = len(params["gin"])
    for l, (w1, b1, w2, b2) in enumerate(params["gin"]):
        din_p = _round_up(w1.shape[0], 128)
        w1p = _pad2d(w1, din_p, Hp)
        b1p = _pad_row(b1, Hp)
        w2p = _pad2d(w2, Hp, Hp)
        b2p = _pad_row(b2, Hp)
        # encoder BatchNorm (eval-mode affine) fused into the last layer
        z = gin_layer(a_hat, z, w1p, b1p, w2p, b2p,
                      enc_scale, enc_shift, alpha_enc,
                      apply_bn=(l == n_layers - 1), tm=tm, tk=tk)
        # TODO(synk): F.dropout in training mode not implemented (identity at inference).

    # projection head: fold eval-mode BatchNorm into the linear, fuse PReLU
    wp = params["proj_w"] * params["proj_bn_scale"][None, :]
    bp = params["proj_b"] * params["proj_bn_scale"] + params["proj_bn_shift"]
    p = linear_prelu(z, _pad2d(wp, Hp, Hp), _pad_row(bp, Hp), alpha_proj, tm=tm)

    return z[:N, :H], p[:N, :H]


# ---------------------------------------------------------------------------
# pure-JAX reference for the same inference-mode forward
# ---------------------------------------------------------------------------
def gconv_reference(x, edge_index, params, *, num_nodes, eps=0.0):
    N = num_nodes
    src, dst = edge_index[0], edge_index[1]
    adj = jnp.zeros((N, N), jnp.float32).at[dst, src].add(1.0)
    a_hat = adj + (1.0 + eps) * jnp.eye(N, dtype=jnp.float32)
    alpha = params["act_alpha"]
    z = x
    for (w1, b1, w2, b2) in params["gin"]:
        agg = a_hat @ z
        h = jnp.maximum(agg @ w1 + b1, 0.0)
        h = h @ w2 + b2
        z = jnp.where(h >= 0.0, h, alpha * h)
    z = z * params["enc_bn_scale"] + params["enc_bn_shift"]
    p = z @ params["proj_w"] + params["proj_b"]
    p = p * params["proj_bn_scale"] + params["proj_bn_shift"]
    p = jnp.where(p >= 0.0, p, params["proj_alpha"] * p)
    return z, p


if __name__ == "__main__":
    num_nodes = 48
    num_edges = 128
    input_dim = 16
    hidden_dim = 32
    num_layers = 2

    key = jax.random.PRNGKey(0)
    kx, ke1, ke2, kp = jax.random.split(key, 4)
    x = jax.random.normal(kx, (num_nodes, input_dim), jnp.float32)
    src = jax.random.randint(ke1, (num_edges,), 0, num_nodes)
    dst = jax.random.randint(ke2, (num_edges,), 0, num_nodes)
    edge_index = jnp.stack([src, dst])

    params = init_gconv_params(kp, input_dim, hidden_dim, num_layers)

    @jax.jit
    def run(x_, edge_index_):
        return gconv_forward(x_, edge_index_, params, num_nodes=num_nodes)

    z, p = run(x, edge_index)
    jax.block_until_ready((z, p))

    z_ref, p_ref = gconv_reference(x, edge_index, params, num_nodes=num_nodes)
    assert z.shape == (num_nodes, hidden_dim)
    assert p.shape == (num_nodes, hidden_dim)
    assert jnp.allclose(z, z_ref, atol=1e-3, rtol=1e-3)
    assert jnp.allclose(p, p_ref, atol=1e-3, rtol=1e-3)

    print("KERNEL_OK")
</pallas_src>

<mosaic_0001>
module attributes {stable_mosaic.version = 11 : i64} {
  func.func private @main(%arg0: i32) attributes {dimension_semantics = [#tpu.dimension_semantics<core_parallel>], iteration_bounds = array<i64: 2>, tpu.core_type = #tpu.core_type<sc_scalar_subcore>, window_params = []} {
    return
  }
}

module attributes {stable_mosaic.version = 11 : i64} {
  func.func private @main(%arg0: i32) attributes {dimension_semantics = [#tpu.dimension_semantics<core_parallel>], iteration_bounds = array<i64: 2>, tpu.core_type = #tpu.core_type<sc_scalar_subcore>, window_params = []} {
    return
  }
}

module attributes {stable_mosaic.version = 11 : i64} {
  func.func @_linear_prelu_kernel(%arg0: i32, %arg1: memref<128x128xf32, #tpu.memory_space<vmem>>, %arg2: memref<128x128xf32, #tpu.memory_space<vmem>>, %arg3: memref<1x128xf32, #tpu.memory_space<vmem>>, %arg4: memref<1xf32, #tpu.memory_space<smem>>, %arg5: memref<128x128xf32, #tpu.memory_space<vmem>>) attributes {dimension_semantics = [#tpu.dimension_semantics<parallel>], iteration_bounds = array<i64: 1>, scalar_prefetch = 0 : i64, scratch_operands = 0 : i64, tpu.core_type = #tpu.core_type<tc>, window_params = [{transform_indices = @transform_0, window_bounds = array<i64: 128, 128>}, {pipeline_mode = #tpu.pipeline_mode<synchronous>, transform_indices = @transform_1, window_bounds = array<i64: 128, 128>}, {pipeline_mode = #tpu.pipeline_mode<synchronous>, transform_indices = @transform_2, window_bounds = array<i64: 1, 128>}, {transform_indices = @transform_3, window_bounds = array<i64: 1>}, {transform_indices = @transform_4, window_bounds = array<i64: 128, 128>}]} {
    %c0 = arith.constant 0 : index
    %c0_0 = arith.constant 0 : index
    %0 = vector.load %arg1[%c0, %c0_0] : memref<128x128xf32, #tpu.memory_space<vmem>>, vector<128x128xf32>
    %c0_1 = arith.constant 0 : index
    %c0_2 = arith.constant 0 : index
    %1 = vector.load %arg2[%c0_1, %c0_2] : memref<128x128xf32, #tpu.memory_space<vmem>>, vector<128x128xf32>
    %cst = arith.constant dense<0.000000e+00> : vector<128x128xf32>
    %2 = tpu.matmul %0, %1, %cst {dimension_numbers = #tpu.dot_dimension_numbers<[1], [0], [0], [1], [0, 0, 1, 1], [], []>} : vector<128x128xf32>, vector<128x128xf32>, vector<128x128xf32> -> vector<128x128xf32>
    %c0_3 = arith.constant 0 : index
    %c0_4 = arith.constant 0 : index
    %3 = vector.load %arg3[%c0_3, %c0_4] : memref<1x128xf32, #tpu.memory_space<vmem>>, vector<1x128xf32>
    %4 = vector.broadcast %3 : vector<1x128xf32> to vector<128x128xf32>
    %5 = arith.addf %2, %4 : vector<128x128xf32>
    %c0_5 = arith.constant 0 : index
    %6 = memref.load %arg4[%c0_5] : memref<1xf32, #tpu.memory_space<smem>>
    %cst_6 = arith.constant 0.000000e+00 : f32
    %7 = vector.broadcast %cst_6 : f32 to vector<128x128xf32>
    %8 = arith.cmpf oge, %5, %7 : vector<128x128xf32>
    %9 = vector.broadcast %6 : f32 to vector<128x128xf32>
    %10 = arith.mulf %9, %5 : vector<128x128xf32>
    %11 = arith.select %8, %5, %10 : vector<128x128xi1>, vector<128x128xf32>
    %c0_7 = arith.constant 0 : index
    %c0_8 = arith.constant 0 : index
    %12 = vector.load %arg5[%c0_7, %c0_8] : memref<128x128xf32, #tpu.memory_space<vmem>>, vector<128x128xf32>
    tpu.vector_store %arg5[%c0_7, %c0_8], %11 {strides = array<i32>} : memref<128x128xf32, #tpu.memory_space<vmem>>, vector<128x128xf32>,
    return
  }
  func.func @transform_0(%arg0: i32) -> (i32, i32) {
    %c0_i32 = arith.constant 0 : i32
    %c0_i32_0 = arith.constant 0 : i32
    return %arg0, %c0_i32 : i32, i32
  }
  func.func @transform_1(%arg0: i32) -> (i32, i32) {
    %c0_i32 = arith.constant 0 : i32
    %c0_i32_0 = arith.constant 0 : i32
    %c0_i32_1 = arith.constant 0 : i32
    return %c0_i32, %c0_i32_0 : i32, i32
  }
  func.func @transform_2(%arg0: i32) -> (i32, i32) {
    %c0_i32 = arith.constant 0 : i32
    %c0_i32_0 = arith.constant 0 : i32
    %c0_i32_1 = arith.constant 0 : i32
    return %c0_i32, %c0_i32_0 : i32, i32
  }
  func.func @transform_3(%arg0: i32) -> i32 {
    %c0_i32 = arith.constant 0 : i32
    %c0_i32_0 = arith.constant 0 : i32
    return %c0_i32 : i32
  }
  func.func @transform_4(%arg0: i32) -> (i32, i32) {
    %c0_i32 = arith.constant 0 : i32
    %c0_i32_0 = arith.constant 0 : i32
    return %arg0, %c0_i32 : i32, i32
  }
}

module attributes {stable_mosaic.version = 11 : i64} {
  func.func @_gin_layer_kernel(%arg0: i32, %arg1: i32, %arg2: memref<128x128xf32, #tpu.memory_space<vmem>>, %arg3: memref<128x128xf32, #tpu.memory_space<vmem>>, %arg4: memref<128x128xf32, #tpu.memory_space<vmem>>, %arg5: memref<1x128xf32, #tpu.memory_space<vmem>>, %arg6: memref<128x128xf32, #tpu.memory_space<vmem>>, %arg7: memref<1x128xf32, #tpu.memory_space<vmem>>, %arg8: memref<1x128xf32, #tpu.memory_space<vmem>>, %arg9: memref<1x128xf32, #tpu.memory_space<vmem>>, %arg10: memref<1xf32, #tpu.memory_space<smem>>, %arg11: memref<128x128xf32, #tpu.memory_space<vmem>>, %arg12: memref<128x128xf32, #tpu.memory_space<vmem>>) attributes {dimension_semantics = [#tpu.dimension_semantics<parallel>, #tpu.dimension_semantics<arbitrary>], iteration_bounds = array<i64: 1, 1>, scalar_prefetch = 0 : i64, scratch_operands = 1 : i64, tpu.core_type = #tpu.core_type<tc>, window_params = [{transform_indices = @transform_0, window_bounds = array<i64: 128, 128>}, {transform_indices = @transform_1, window_bounds = array<i64: 128, 128>}, {pipeline_mode = #tpu.pipeline_mode<synchronous>, transform_indices = @transform_2, window_bounds = array<i64: 128, 128>}, {pipeline_mode = #tpu.pipeline_mode<synchronous>, transform_indices = @transform_3, window_bounds = array<i64: 1, 128>}, {pipeline_mode = #tpu.pipeline_mode<synchronous>, transform_indices = @transform_4, window_bounds = array<i64: 128, 128>}, {pipeline_mode = #tpu.pipeline_mode<synchronous>, transform_indices = @transform_5, window_bounds = array<i64: 1, 128>}, {pipeline_mode = #tpu.pipeline_mode<synchronous>, transform_indices = @transform_6, window_bounds = array<i64: 1, 128>}, {pipeline_mode = #tpu.pipeline_mode<synchronous>, transform_indices = @transform_7, window_bounds = array<i64: 1, 128>}, {transform_indices = @transform_8, window_bounds = array<i64: 1>}, {transform_indices = @transform_9, window_bounds = array<i64: 128, 128>}]} {
    %c0_i32 = arith.constant 0 : i32
    %0 = arith.cmpi eq, %arg1, %c0_i32 : i32
    %1 = arith.extui %0 : i1 to i32
    %c0_i32_0 = arith.constant 0 : i32
    %2 = arith.cmpi ne, %1, %c0_i32_0 : i32
    scf.if %2 {
      %cst_10 = arith.constant 0.000000e+00 : f32
      %12 = vector.broadcast %cst_10 : f32 to vector<128x128xf32>
      %c0_11 = arith.constant 0 : index
      %c0_12 = arith.constant 0 : index
      %13 = vector.load %arg12[%c0_11, %c0_12] : memref<128x128xf32, #tpu.memory_space<vmem>>, vector<128x128xf32>
      tpu.vector_store %arg12[%c0_11, %c0_12], %12 {strides = array<i32>} : memref<128x128xf32, #tpu.memory_space<vmem>>, vector<128x128xf32>,
    } else {
    }
    %c0 = arith.constant 0 : index
    %c0_1 = arith.constant 0 : index
    %3 = vector.load %arg12[%c0, %c0_1] : memref<128x128xf32, #tpu.memory_space<vmem>>, vector<128x128xf32>
    %c0_2 = arith.constant 0 : index
    %c0_3 = arith.constant 0 : index
    %4 = vector.load %arg2[%c0_2, %c0_3] : memref<128x128xf32, #tpu.memory_space<vmem>>, vector<128x128xf32>
    %c0_4 = arith.constant 0 : index
    %c0_5 = arith.constant 0 : index
    %5 = vector.load %arg3[%c0_4, %c0_5] : memref<128x128xf32, #tpu.memory_space<vmem>>, vector<128x128xf32>
    %cst = arith.constant dense<0.000000e+00> : vector<128x128xf32>
    %6 = tpu.matmul %4, %5, %cst {dimension_numbers = #tpu.dot_dimension_numbers<[1], [0], [0], [1], [0, 0, 1, 1], [], []>} : vector<128x128xf32>, vector<128x128xf32>, vector<128x128xf32> -> vector<128x128xf32>
    %7 = arith.addf %3, %6 : vector<128x128xf32>
    %c0_6 = arith.constant 0 : index
    %c0_7 = arith.constant 0 : index
    %8 = vector.load %arg12[%c0_6, %c0_7] : memref<128x128xf32, #tpu.memory_space<vmem>>, vector<128x128xf32>
    tpu.vector_store %arg12[%c0_6, %c0_7], %7 {strides = array<i32>} : memref<128x128xf32, #tpu.memory_space<vmem>>, vector<128x128xf32>,
    %c0_i32_8 = arith.constant 0 : i32
    %9 = arith.cmpi eq, %arg1, %c0_i32_8 : i32
    %10 = arith.extui %9 : i1 to i32
    %c0_i32_9 = arith.constant 0 : i32
    %11 = arith.cmpi ne, %10, %c0_i32_9 : i32
    scf.if %11 {
      %c0_10 = arith.constant 0 : index
      %c0_11 = arith.constant 0 : index
      %12 = vector.load %arg12[%c0_10, %c0_11] : memref<128x128xf32, #tpu.memory_space<vmem>>, vector<128x128xf32>
      %c0_12 = arith.constant 0 : index
      %c0_13 = arith.constant 0 : index
      %13 = vector.load %arg4[%c0_12, %c0_13] : memref<128x128xf32, #tpu.memory_space<vmem>>, vector<128x128xf32>
      %cst_14 = arith.constant dense<0.000000e+00> : vector<128x128xf32>
      %14 = tpu.matmul %12, %13, %cst_14 {dimension_numbers = #tpu.dot_dimension_numbers<[1], [0], [0], [1], [0, 0, 1, 1], [], []>} : vector<128x128xf32>, vector<128x128xf32>, vector<128x128xf32> -> vector<128x128xf32>
      %c0_15 = arith.constant 0 : index
      %c0_16 = arith.constant 0 : index
      %15 = vector.load %arg5[%c0_15, %c0_16] : memref<1x128xf32, #tpu.memory_space<vmem>>, vector<1x128xf32>
      %16 = vector.broadcast %15 : vector<1x128xf32> to vector<128x128xf32>
      %17 = arith.addf %14, %16 : vector<128x128xf32>
      %cst_17 = arith.constant 0.000000e+00 : f32
      %18 = vector.broadcast %cst_17 : f32 to vector<128x128xf32>
      %19 = arith.maximumf %17, %18 : vector<128x128xf32>
      %c0_18 = arith.constant 0 : index
      %c0_19 = arith.constant 0 : index
      %20 = vector.load %arg6[%c0_18, %c0_19] : memref<128x128xf32, #tpu.memory_space<vmem>>, vector<128x128xf32>
      %cst_20 = arith.constant dense<0.000000e+00> : vector<128x128xf32>
      %21 = tpu.matmul %19, %20, %cst_20 {dimension_numbers = #tpu.dot_dimension_numbers<[1], [0], [0], [1], [0, 0, 1, 1], [], []>} : vector<128x128xf32>, vector<128x128xf32>, vector<128x128xf32> -> vector<128x128xf32>
      %c0_21 = arith.constant 0 : index
      %c0_22 = arith.constant 0 : index
      %22 = vector.load %arg7[%c0_21, %c0_22] : memref<1x128xf32, #tpu.memory_space<vmem>>, vector<1x128xf32>
      %23 = vector.broadcast %22 : vector<1x128xf32> to vector<128x128xf32>
      %24 = arith.addf %21, %23 : vector<128x128xf32>
      %c0_23 = arith.constant 0 : index
      %25 = memref.load %arg10[%c0_23] : memref<1xf32, #tpu.memory_space<smem>>
      %cst_24 = arith.constant 0.000000e+00 : f32
      %26 = vector.broadcast %cst_24 : f32 to vector<128x128xf32>
      %27 = arith.cmpf oge, %24, %26 : vector<128x128xf32>
      %28 = vector.broadcast %25 : f32 to vector<128x128xf32>
      %29 = arith.mulf %28, %24 : vector<128x128xf32>
      %30 = arith.select %27, %24, %29 : vector<128x128xi1>, vector<128x128xf32>
      %c0_25 = arith.constant 0 : index
      %c0_26 = arith.constant 0 : index
      %31 = vector.load %arg8[%c0_25, %c0_26] : memref<1x128xf32, #tpu.memory_space<vmem>>, vector<1x128xf32>
      %32 = vector.broadcast %31 : vector<1x128xf32> to vector<128x128xf32>
      %33 = arith.mulf %30, %32 : vector<128x128xf32>
      %c0_27 = arith.constant 0 : index
      %c0_28 = arith.constant 0 : index
      %34 = vector.load %arg9[%c0_27, %c0_28] : memref<1x128xf32, #tpu.memory_space<vmem>>, vector<1x128xf32>
      %35 = vector.broadcast %34 : vector<1x128xf32> to vector<128x128xf32>
      %36 = arith.addf %33, %35 : vector<128x128xf32>
      %c0_29 = arith.constant 0 : index
      %c0_30 = arith.constant 0 : index
      %37 = vector.load %arg11[%c0_29, %c0_30] : memref<128x128xf32, #tpu.memory_space<vmem>>, vector<128x128xf32>
      tpu.vector_store %arg11[%c0_29, %c0_30], %36 {strides = array<i32>} : memref<128x128xf32, #tpu.memory_space<vmem>>, vector<128x128xf32>,
    } else {
    }
    return
  }
  func.func @transform_0(%arg0: i32, %arg1: i32) -> (i32, i32) {
    %c0_i32 = arith.constant 0 : i32
    return %arg0, %arg1 : i32, i32
  }
  func.func @transform_1(%arg0: i32, %arg1: i32) -> (i32, i32) {
    %c0_i32 = arith.constant 0 : i32
    %c0_i32_0 = arith.constant 0 : i32
    return %arg1, %c0_i32 : i32, i32
  }
  func.func @transform_2(%arg0: i32, %arg1: i32) -> (i32, i32) {
    %c0_i32 = arith.constant 0 : i32
    %c0_i32_0 = arith.constant 0 : i32
    %c0_i32_1 = arith.constant 0 : i32
    return %c0_i32, %c0_i32_0 : i32, i32
  }
  func.func @transform_3(%arg0: i32, %arg1: i32) -> (i32, i32) {
    %c0_i32 = arith.constant 0 : i32
    %c0_i32_0 = arith.constant 0 : i32
    %c0_i32_1 = arith.constant 0 : i32
    return %c0_i32, %c0_i32_0 : i32, i32
  }
  func.func @transform_4(%arg0: i32, %arg1: i32) -> (i32, i32) {
    %c0_i32 = arith.constant 0 : i32
    %c0_i32_0 = arith.constant 0 : i32
    %c0_i32_1 = arith.constant 0 : i32
    return %c0_i32, %c0_i32_0 : i32, i32
  }
  func.func @transform_5(%arg0: i32, %arg1: i32) -> (i32, i32) {
    %c0_i32 = arith.constant 0 : i32
    %c0_i32_0 = arith.constant 0 : i32
    %c0_i32_1 = arith.constant 0 : i32
    return %c0_i32, %c0_i32_0 : i32, i32
  }
  func.func @transform_6(%arg0: i32, %arg1: i32) -> (i32, i32) {
    %c0_i32 = arith.constant 0 : i32
    %c0_i32_0 = arith.constant 0 : i32
    %c0_i32_1 = arith.constant 0 : i32
    return %c0_i32, %c0_i32_0 : i32, i32
  }
  func.func @transform_7(%arg0: i32, %arg1: i32) -> (i32, i32) {
    %c0_i32 = arith.constant 0 : i32
    %c0_i32_0 = arith.constant 0 : i32
    %c0_i32_1 = arith.constant 0 : i32
    return %c0_i32, %c0_i32_0 : i32, i32
  }
  func.func @transform_8(%arg0: i32, %arg1: i32) -> i32 {
    %c0_i32 = arith.constant 0 : i32
    %c0_i32_0 = arith.constant 0 : i32
    return %c0_i32 : i32
  }
  func.func @transform_9(%arg0: i32, %arg1: i32) -> (i32, i32) {
    %c0_i32 = arith.constant 0 : i32
    %c0_i32_0 = arith.constant 0 : i32
    return %arg0, %c0_i32 : i32, i32
  }
}

module attributes {stable_mosaic.version = 11 : i64} {
  func.func @_gin_layer_kernel(%arg0: i32, %arg1: i32, %arg2: memref<128x128xf32, #tpu.memory_space<vmem>>, %arg3: memref<128x128xf32, #tpu.memory_space<vmem>>, %arg4: memref<128x128xf32, #tpu.memory_space<vmem>>, %arg5: memref<1x128xf32, #tpu.memory_space<vmem>>, %arg6: memref<128x128xf32, #tpu.memory_space<vmem>>, %arg7: memref<1x128xf32, #tpu.memory_space<vmem>>, %arg8: memref<1x128xf32, #tpu.memory_space<vmem>>, %arg9: memref<1x128xf32, #tpu.memory_space<vmem>>, %arg10: memref<1xf32, #tpu.memory_space<smem>>, %arg11: memref<128x128xf32, #tpu.memory_space<vmem>>, %arg12: memref<128x128xf32, #tpu.memory_space<vmem>>) attributes {dimension_semantics = [#tpu.dimension_semantics<parallel>, #tpu.dimension_semantics<arbitrary>], iteration_bounds = array<i64: 1, 1>, scalar_prefetch = 0 : i64, scratch_operands = 1 : i64, tpu.core_type = #tpu.core_type<tc>, window_params = [{transform_indices = @transform_0, window_bounds = array<i64: 128, 128>}, {transform_indices = @transform_1, window_bounds = array<i64: 128, 128>}, {pipeline_mode = #tpu.pipeline_mode<synchronous>, transform_indices = @transform_2, window_bounds = array<i64: 128, 128>}, {pipeline_mode = #tpu.pipeline_mode<synchronous>, transform_indices = @transform_3, window_bounds = array<i64: 1, 128>}, {pipeline_mode = #tpu.pipeline_mode<synchronous>, transform_indices = @transform_4, window_bounds = array<i64: 128, 128>}, {pipeline_mode = #tpu.pipeline_mode<synchronous>, transform_indices = @transform_5, window_bounds = array<i64: 1, 128>}, {pipeline_mode = #tpu.pipeline_mode<synchronous>, transform_indices = @transform_6, window_bounds = array<i64: 1, 128>}, {pipeline_mode = #tpu.pipeline_mode<synchronous>, transform_indices = @transform_7, window_bounds = array<i64: 1, 128>}, {transform_indices = @transform_8, window_bounds = array<i64: 1>}, {transform_indices = @transform_9, window_bounds = array<i64: 128, 128>}]} {
    %c0_i32 = arith.constant 0 : i32
    %0 = arith.cmpi eq, %arg1, %c0_i32 : i32
    %1 = arith.extui %0 : i1 to i32
    %c0_i32_0 = arith.constant 0 : i32
    %2 = arith.cmpi ne, %1, %c0_i32_0 : i32
    scf.if %2 {
      %cst_10 = arith.constant 0.000000e+00 : f32
      %12 = vector.broadcast %cst_10 : f32 to vector<128x128xf32>
      %c0_11 = arith.constant 0 : index
      %c0_12 = arith.constant 0 : index
      %13 = vector.load %arg12[%c0_11, %c0_12] : memref<128x128xf32, #tpu.memory_space<vmem>>, vector<128x128xf32>
      tpu.vector_store %arg12[%c0_11, %c0_12], %12 {strides = array<i32>} : memref<128x128xf32, #tpu.memory_space<vmem>>, vector<128x128xf32>,
    } else {
    }
    %c0 = arith.constant 0 : index
    %c0_1 = arith.constant 0 : index
    %3 = vector.load %arg12[%c0, %c0_1] : memref<128x128xf32, #tpu.memory_space<vmem>>, vector<128x128xf32>
    %c0_2 = arith.constant 0 : index
    %c0_3 = arith.constant 0 : index
    %4 = vector.load %arg2[%c0_2, %c0_3] : memref<128x128xf32, #tpu.memory_space<vmem>>, vector<128x128xf32>
    %c0_4 = arith.constant 0 : index
    %c0_5 = arith.constant 0 : index
    %5 = vector.load %arg3[%c0_4, %c0_5] : memref<128x128xf32, #tpu.memory_space<vmem>>, vector<128x128xf32>
    %cst = arith.constant dense<0.000000e+00> : vector<128x128xf32>
    %6 = tpu.matmul %4, %5, %cst {dimension_numbers = #tpu.dot_dimension_numbers<[1], [0], [0], [1], [0, 0, 1, 1], [], []>} : vector<128x128xf32>, vector<128x128xf32>, vector<128x128xf32> -> vector<128x128xf32>
    %7 = arith.addf %3, %6 : vector<128x128xf32>
    %c0_6 = arith.constant 0 : index
    %c0_7 = arith.constant 0 : index
    %8 = vector.load %arg12[%c0_6, %c0_7] : memref<128x128xf32, #tpu.memory_space<vmem>>, vector<128x128xf32>
    tpu.vector_store %arg12[%c0_6, %c0_7], %7 {strides = array<i32>} : memref<128x128xf32, #tpu.memory_space<vmem>>, vector<128x128xf32>,
    %c0_i32_8 = arith.constant 0 : i32
    %9 = arith.cmpi eq, %arg1, %c0_i32_8 : i32
    %10 = arith.extui %9 : i1 to i32
    %c0_i32_9 = arith.constant 0 : i32
    %11 = arith.cmpi ne, %10, %c0_i32_9 : i32
    scf.if %11 {
      %c0_10 = arith.constant 0 : index
      %c0_11 = arith.constant 0 : index
      %12 = vector.load %arg12[%c0_10, %c0_11] : memref<128x128xf32, #tpu.memory_space<vmem>>, vector<128x128xf32>
      %c0_12 = arith.constant 0 : index
      %c0_13 = arith.constant 0 : index
      %13 = vector.load %arg4[%c0_12, %c0_13] : memref<128x128xf32, #tpu.memory_space<vmem>>, vector<128x128xf32>
      %cst_14 = arith.constant dense<0.000000e+00> : vector<128x128xf32>
      %14 = tpu.matmul %12, %13, %cst_14 {dimension_numbers = #tpu.dot_dimension_numbers<[1], [0], [0], [1], [0, 0, 1, 1], [], []>} : vector<128x128xf32>, vector<128x128xf32>, vector<128x128xf32> -> vector<128x128xf32>
      %c0_15 = arith.constant 0 : index
      %c0_16 = arith.constant 0 : index
      %15 = vector.load %arg5[%c0_15, %c0_16] : memref<1x128xf32, #tpu.memory_space<vmem>>, vector<1x128xf32>
      %16 = vector.broadcast %15 : vector<1x128xf32> to vector<128x128xf32>
      %17 = arith.addf %14, %16 : vector<128x128xf32>
      %cst_17 = arith.constant 0.000000e+00 : f32
      %18 = vector.broadcast %cst_17 : f32 to vector<128x128xf32>
      %19 = arith.maximumf %17, %18 : vector<128x128xf32>
      %c0_18 = arith.constant 0 : index
      %c0_19 = arith.constant 0 : index
      %20 = vector.load %arg6[%c0_18, %c0_19] : memref<128x128xf32, #tpu.memory_space<vmem>>, vector<128x128xf32>
      %cst_20 = arith.constant dense<0.000000e+00> : vector<128x128xf32>
      %21 = tpu.matmul %19, %20, %cst_20 {dimension_numbers = #tpu.dot_dimension_numbers<[1], [0], [0], [1], [0, 0, 1, 1], [], []>} : vector<128x128xf32>, vector<128x128xf32>, vector<128x128xf32> -> vector<128x128xf32>
      %c0_21 = arith.constant 0 : index
      %c0_22 = arith.constant 0 : index
      %22 = vector.load %arg7[%c0_21, %c0_22] : memref<1x128xf32, #tpu.memory_space<vmem>>, vector<1x128xf32>
      %23 = vector.broadcast %22 : vector<1x128xf32> to vector<128x128xf32>
      %24 = arith.addf %21, %23 : vector<128x128xf32>
      %c0_23 = arith.constant 0 : index
      %25 = memref.load %arg10[%c0_23] : memref<1xf32, #tpu.memory_space<smem>>
      %cst_24 = arith.constant 0.000000e+00 : f32
      %26 = vector.broadcast %cst_24 : f32 to vector<128x128xf32>
      %27 = arith.cmpf oge, %24, %26 : vector<128x128xf32>
      %28 = vector.broadcast %25 : f32 to vector<128x128xf32>
      %29 = arith.mulf %28, %24 : vector<128x128xf32>
      %30 = arith.select %27, %24, %29 : vector<128x128xi1>, vector<128x128xf32>
      %c0_25 = arith.constant 0 : index
      %c0_26 = arith.constant 0 : index
      %31 = vector.load %arg11[%c0_25, %c0_26] : memref<128x128xf32, #tpu.memory_space<vmem>>, vector<128x128xf32>
      tpu.vector_store %arg11[%c0_25, %c0_26], %30 {strides = array<i32>} : memref<128x128xf32, #tpu.memory_space<vmem>>, vector<128x128xf32>,
    } else {
    }
    return
  }
  func.func @transform_0(%arg0: i32, %arg1: i32) -> (i32, i32) {
    %c0_i32 = arith.constant 0 : i32
    return %arg0, %arg1 : i32, i32
  }
  func.func @transform_1(%arg0: i32, %arg1: i32) -> (i32, i32) {
    %c0_i32 = arith.constant 0 : i32
    %c0_i32_0 = arith.constant 0 : i32
    return %arg1, %c0_i32 : i32, i32
  }
  func.func @transform_2(%arg0: i32, %arg1: i32) -> (i32, i32) {
    %c0_i32 = arith.constant 0 : i32
    %c0_i32_0 = arith.constant 0 : i32
    %c0_i32_1 = arith.constant 0 : i32
    return %c0_i32, %c0_i32_0 : i32, i32
  }
  func.func @transform_3(%arg0: i32, %arg1: i32) -> (i32, i32) {
    %c0_i32 = arith.constant 0 : i32
    %c0_i32_0 = arith.constant 0 : i32
    %c0_i32_1 = arith.constant 0 : i32
    return %c0_i32, %c0_i32_0 : i32, i32
  }
  func.func @transform_4(%arg0: i32, %arg1: i32) -> (i32, i32) {
    %c0_i32 = arith.constant 0 : i32
    %c0_i32_0 = arith.constant 0 : i32
    %c0_i32_1 = arith.constant 0 : i32
    return %c0_i32, %c0_i32_0 : i32, i32
  }
  func.func @transform_5(%arg0: i32, %arg1: i32) -> (i32, i32) {
    %c0_i32 = arith.constant 0 : i32
    %c0_i32_0 = arith.constant 0 : i32
    %c0_i32_1 = arith.constant 0 : i32
    return %c0_i32, %c0_i32_0 : i32, i32
  }
  func.func @transform_6(%arg0: i32, %arg1: i32) -> (i32, i32) {
    %c0_i32 = arith.constant 0 : i32
    %c0_i32_0 = arith.constant 0 : i32
    %c0_i32_1 = arith.constant 0 : i32
    return %c0_i32, %c0_i32_0 : i32, i32
  }
  func.func @transform_7(%arg0: i32, %arg1: i32) -> (i32, i32) {
    %c0_i32 = arith.constant 0 : i32
    %c0_i32_0 = arith.constant 0 : i32
    %c0_i32_1 = arith.constant 0 : i32
    return %c0_i32, %c0_i32_0 : i32, i32
  }
  func.func @transform_8(%arg0: i32, %arg1: i32) -> i32 {
    %c0_i32 = arith.constant 0 : i32
    %c0_i32_0 = arith.constant 0 : i32
    return %c0_i32 : i32
  }
  func.func @transform_9(%arg0: i32, %arg1: i32) -> (i32, i32) {
    %c0_i32 = arith.constant 0 : i32
    %c0_i32_0 = arith.constant 0 : i32
    return %arg0, %c0_i32 : i32, i32
  }
}

</mosaic_0001>

<llo_original>
// kernel: run.5
$region0: #{run.5}
  #allocation0 [shape = 'u32[]', space=smem, size = 0x4, offset = 0x4, fixed_abs, tag = 'smem constant byte address 0x4 - core index']
  #allocation1 [shape = 'u32[144,128]{1,0:T(1,128)}', space=vmem, size = 0x12000, scoped, tag = 'internal scratch']
  #allocation2 [shape = 'f32[1]{0:T(128)S(6)}', space=smem, size = 0x200, scoped, tag = 'scoped memory for run.5']
  %s0 = inlined_call_operand.vmem [shape: f32[128,128], index: 0, kind: input, shape index: {}]
  %s1 = inlined_call_operand.vmem [shape: f32[128,128], index: 1, kind: input, shape index: {}]
  %s2 = inlined_call_operand.vmem [shape: f32[1,128], index: 2, kind: input, shape index: {}]
  %s3 = inlined_call_operand.<no memory space> [shape: f32[1], index: 3, kind: input, shape index: {}]
  %s4 = inlined_call_operand.vmem [shape: f32[128,128], index: 4, kind: output, shape index: {}]
  %s5 = sld [smem:[#allocation0]]
  $region26: #{run.5} parent=0
    _
  %s7 = ssub.s32 1, %s5
  %s8 = scalar_select 0, %s7, %s5
  %9 = sst [smem:[#allocation2]] %s3
  // Predicated region
  $region2: #{run.5} parent=0 // pred_check
    _
  $region3: #{run.5} parent=0 // pred_check_branch
    %11 = sbr.rel (0) target = $region5
  $region4: #{run.5} parent=0 // pred_region
    _
  $region5: #{run.5} parent=0 // pred_fallthru
    _
  // Predicated region
  $region6: #{run.5} parent=0 // pred_check
    _
  $region7: #{run.5} parent=0 // pred_check_branch
    %13 = sbr.rel (0) target = $region9
  $region8: #{run.5} parent=0 // pred_region
    _
  $region9: #{run.5} parent=0 // pred_fallthru
    _
  // Predicated region
  $region10: #{run.5} parent=0 // pred_check
    _
  $region11: #{run.5} parent=0 // pred_check_branch
    %15 = sbr.rel (0) target = $region13
  $region12: #{run.5} parent=0 // pred_region
    _
  $region13: #{run.5} parent=0 // pred_fallthru
    _
  // Predicated region
  $region14: #{run.5} parent=0 // pred_check
    _
  $region15: #{run.5} parent=0 // pred_check_branch
    %17 = sbr.rel (0) target = $region17
  $region16: #{run.5} parent=0 // pred_region
    _
  $region17: #{run.5} parent=0 // pred_fallthru
    _
  %v18 = vld [vmem:[%s0] sm:$0xff]
  %v19 = vld [vmem:[%s0 + $0x8] sm:$0xff]
  %v20 = vld [vmem:[%s0 + $0x10] sm:$0xff]
  %v21 = vld [vmem:[%s0 + $0x18] sm:$0xff]
  %v22 = vld [vmem:[%s0 + $0x20] sm:$0xff]
  %v23 = vld [vmem:[%s0 + $0x28] sm:$0xff]
  %v24 = vld [vmem:[%s0 + $0x30] sm:$0xff]
  %v25 = vld [vmem:[%s0 + $0x38] sm:$0xff]
  %v26 = vld [vmem:[%s0 + $0x40] sm:$0xff]
  %v27 = vld [vmem:[%s0 + $0x48] sm:$0xff]
  %v28 = vld [vmem:[%s0 + $0x50] sm:$0xff]
  %v29 = vld [vmem:[%s0 + $0x58] sm:$0xff]
  %v30 = vld [vmem:[%s0 + $0x60] sm:$0xff]
  %v31 = vld [vmem:[%s0 + $0x68] sm:$0xff]
  %v32 = vld [vmem:[%s0 + $0x70] sm:$0xff]
  %v33 = vld [vmem:[%s0 + $0x78] sm:$0xff]
  %v34 = vld [vmem:[%s1] sm:$0xff]
  %v35 = vld [vmem:[%s1 + $0x8] sm:$0xff]
  %v36 = vld [vmem:[%s1 + $0x10] sm:$0xff]
  %v37 = vld [vmem:[%s1 + $0x18] sm:$0xff]
  %v38 = vld [vmem:[%s1 + $0x20] sm:$0xff]
  %v39 = vld [vmem:[%s1 + $0x28] sm:$0xff]
  %v40 = vld [vmem:[%s1 + $0x30] sm:$0xff]
  %v41 = vld [vmem:[%s1 + $0x38] sm:$0xff]
  %v42 = vld [vmem:[%s1 + $0x40] sm:$0xff]
  %v43 = vld [vmem:[%s1 + $0x48] sm:$0xff]
  %v44 = vld [vmem:[%s1 + $0x50] sm:$0xff]
  %v45 = vld [vmem:[%s1 + $0x58] sm:$0xff]
  %v46 = vld [vmem:[%s1 + $0x60] sm:$0xff]
  %v47 = vld [vmem:[%s1 + $0x68] sm:$0xff]
  %v48 = vld [vmem:[%s1 + $0x70] sm:$0xff]
  %v49 = vld [vmem:[%s1 + $0x78] sm:$0xff]
  %v50 = vld [vmem:[%s2] sm:$0x1]
  %v52 = vlaneseq
  %v53 = vshrl.u32 %v52, 7
  %v54 = vsub.s32 0, %v53
  %v55 = vrot.slane %v50, %v54
  %57 = vmatprep.subr.mxu0 0.0
  %58 = vmatpush1.msra.mxu0 %v34
  %59 = vmatprep.subr.mxu0 0.0
  %60 = vmatpush1.msra.mxu0 %v35
  %61 = vmatprep.subr.mxu0 0.0
  %62 = vmatpush1.msra.mxu0 %v36
  %63 = vmatprep.subr.mxu0 0.0
  %64 = vmatpush1.msra.mxu0 %v37
  %65 = vmatprep.subr.mxu0 0.0
  %66 = vmatpush1.msra.mxu0 %v38
  %67 = vmatprep.subr.mxu0 0.0
  %68 = vmatpush1.msra.mxu0 %v39
  %69 = vmatprep.subr.mxu0 0.0
  %70 = vmatpush1.msra.mxu0 %v40
  %71 = vmatprep.subr.mxu0 0.0
  %72 = vmatpush1.msra.mxu0 %v41
  %73 = vmatprep.subr.mxu0 0.0
  %74 = vmatpush1.msra.mxu0 %v42
  %75 = vmatprep.subr.mxu0 0.0
  %76 = vmatpush1.msra.mxu0 %v43
  %77 = vmatprep.subr.mxu0 0.0
  %78 = vmatpush1.msra.mxu0 %v44
  %79 = vmatprep.subr.mxu0 0.0
  %80 = vmatpush1.msra.mxu0 %v45
  %81 = vmatprep.subr.mxu0 0.0
  %82 = vmatpush1.msra.mxu0 %v46
  %83 = vmatprep.subr.mxu0 0.0
  %84 = vmatpush1.msra.mxu0 %v47
  %85 = vmatprep.subr.mxu0 0.0
  %86 = vmatpush1.msra.mxu0 %v48
  %87 = vmatprep.subr.mxu0 0.0
  %88 = vmatpush1.msra.mxu0 %v49
  %89 = vmatprep.subr.mxu0 0.0
  %90 = vmatpush1.msra.mxu0 0.0
  %91 = vmatprep.subr.mxu0 0.0
  %92 = vmatpush1.msra.mxu0 0.0
  %93 = vmatprep.subr.mxu0 0.0
  %94 = vmatpush1.msra.mxu0 0.0
  %95 = vmatprep.subr.mxu0 0.0
  %96 = vmatpush1.msra.mxu0 0.0
  %97 = vmatprep.subr.mxu0 0.0
  %98 = vmatpush1.msra.mxu0 0.0
  %99 = vmatprep.subr.mxu0 0.0
  %100 = vmatpush1.msra.mxu0 0.0
  %101 = vmatprep.subr.mxu0 0.0
  %102 = vmatpush1.msra.mxu0 0.0
  %103 = vmatprep.subr.mxu0 0.0
  %104 = vmatpush1.msra.mxu0 0.0
  %105 = vmatprep.subr.mxu0 0.0
  %106 = vmatpush1.msra.mxu0 0.0
  %107 = vmatprep.subr.mxu0 0.0
  %108 = vmatpush1.msra.mxu0 0.0
  %109 = vmatprep.subr.mxu0 0.0
  %110 = vmatpush1.msra.mxu0 0.0
  %111 = vmatprep.subr.mxu0 0.0
  %112 = vmatpush1.msra.mxu0 0.0
  %113 = vmatprep.subr.mxu0 0.0
  %114 = vmatpush1.msra.mxu0 0.0
  %115 = vmatprep.subr.mxu0 0.0
  %116 = vmatpush1.msra.mxu0 0.0
  %117 = vmatprep.subr.mxu0 0.0
  %118 = vmatpush1.msra.mxu0 0.0
  %119 = vmatprep.subr.mxu0 0.0
  %120 = vmatpush1.msra.mxu0 0.0
  %121 = vmatprep.mubr.f32.mxu0 0.0
  %122 = vmatmul.mubr.f32.gmra.mrb[0].mxu0 %v18
  %v123 = vpop.f32.mrb[0].mxu0
  %v124 = vadd.f32 %v55, %v123
  %v125 = vpop.f32.mrb[0].mxu0
  %126 = vmatprep.mubr.f32.mxu0 0.0
  %127 = vmatmul.mubr.f32.gmra.mrb[0].mxu0 %v19
  %v128 = vpop.f32.mrb[0].mxu0
  %v129 = vadd.f32 %v55, %v128
  %v130 = vpop.f32.mrb[0].mxu0
  %131 = vmatprep.mubr.f32.mxu0 0.0
  %132 = vmatmul.mubr.f32.gmra.mrb[0].mxu0 %v20
  %v133 = vpop.f32.mrb[0].mxu0
  %v134 = vadd.f32 %v55, %v133
  %v135 = vpop.f32.mrb[0].mxu0
  %136 = vmatprep.mubr.f32.mxu0 0.0
  %137 = vmatmul.mubr.f32.gmra.mrb[0].mxu0 %v21
  %v138 = vpop.f32.mrb[0].mxu0
  %v139 = vadd.f32 %v55, %v138
  %v140 = vpop.f32.mrb[0].mxu0
  %141 = vmatprep.mubr.f32.mxu0 0.0
  %142 = vmatmul.mubr.f32.gmra.mrb[0].mxu0 %v22
  %v143 = vpop.f32.mrb[0].mxu0
  %v144 = vadd.f32 %v55, %v143
  %v145 = vpop.f32.mrb[0].mxu0
  %146 = vmatprep.mubr.f32.mxu0 0.0
  %147 = vmatmul.mubr.f32.gmra.mrb[0].mxu0 %v23
  %v148 = vpop.f32.mrb[0].mxu0
  %v149 = vadd.f32 %v55, %v148
  %v150 = vpop.f32.mrb[0].mxu0
  %151 = vmatprep.mubr.f32.mxu0 0.0
  %152 = vmatmul.mubr.f32.gmra.mrb[0].mxu0 %v24
  %v153 = vpop.f32.mrb[0].mxu0
  %v154 = vadd.f32 %v55, %v153
  %v155 = vpop.f32.mrb[0].mxu0
  %156 = vmatprep.mubr.f32.mxu0 0.0
  %157 = vmatmul.mubr.f32.gmra.mrb[0].mxu0 %v25
  %v158 = vpop.f32.mrb[0].mxu0
  %v159 = vadd.f32 %v55, %v158
  %v160 = vpop.f32.mrb[0].mxu0
  %161 = vmatprep.mubr.f32.mxu0 0.0
  %162 = vmatmul.mubr.f32.gmra.mrb[0].mxu0 %v26
  %v163 = vpop.f32.mrb[0].mxu0
  %v164 = vadd.f32 %v55, %v163
  %v165 = vpop.f32.mrb[0].mxu0
  %166 = vmatprep.mubr.f32.mxu0 0.0
  %167 = vmatmul.mubr.f32.gmra.mrb[0].mxu0 %v27
  %v168 = vpop.f32.mrb[0].mxu0
  %v169 = vadd.f32 %v55, %v168
  %v170 = vpop.f32.mrb[0].mxu0
  %171 = vmatprep.mubr.f32.mxu0 0.0
  %172 = vmatmul.mubr.f32.gmra.mrb[0].mxu0 %v28
  %v173 = vpop.f32.mrb[0].mxu0
  %v174 = vadd.f32 %v55, %v173
  %v175 = vpop.f32.mrb[0].mxu0
  %176 = vmatprep.mubr.f32.mxu0 0.0
  %177 = vmatmul.mubr.f32.gmra.mrb[0].mxu0 %v29
  %v178 = vpop.f32.mrb[0].mxu0
  %v179 = vadd.f32 %v55, %v178
  %v180 = vpop.f32.mrb[0].mxu0
  %181 = vmatprep.mubr.f32.mxu0 0.0
  %182 = vmatmul.mubr.f32.gmra.mrb[0].mxu0 %v30
  %v183 = vpop.f32.mrb[0].mxu0
  %v184 = vadd.f32 %v55, %v183
  %v185 = vpop.f32.mrb[0].mxu0
  %186 = vmatprep.mubr.f32.mxu0 0.0
  %187 = vmatmul.mubr.f32.gmra.mrb[0].mxu0 %v31
  %v188 = vpop.f32.mrb[0].mxu0
  %v189 = vadd.f32 %v55, %v188
  %v190 = vpop.f32.mrb[0].mxu0
  %191 = vmatprep.mubr.f32.mxu0 0.0
  %192 = vmatmul.mubr.f32.gmra.mrb[0].mxu0 %v32
  %v193 = vpop.f32.mrb[0].mxu0
  %v194 = vadd.f32 %v55, %v193
  %v195 = vpop.f32.mrb[0].mxu0
  %196 = vmatprep.mubr.f32.mxu0 0.0
  %197 = vmatmul.mubr.f32.gmra.mrb[0].mxu0 %v33
  %v198 = vpop.f32.mrb[0].mxu0
  %v199 = vadd.f32 %v55, %v198
  %v200 = vpop.f32.mrb[0].mxu0
  %201 = vdwg.mxu0
  %s202 = sld [smem:[#allocation2]]
  %vm203 = vcmp.ge.f32.partialorder %v124, 0.0
  %vm204 = vcmp.ge.f32.partialorder %v129, 0.0
  %vm205 = vcmp.ge.f32.partialorder %v134, 0.0
  %vm206 = vcmp.ge.f32.partialorder %v139, 0.0
  %vm207 = vcmp.ge.f32.partialorder %v144, 0.0
  %vm208 = vcmp.ge.f32.partialorder %v149, 0.0
  %vm209 = vcmp.ge.f32.partialorder %v154, 0.0
  %vm210 = vcmp.ge.f32.partialorder %v159, 0.0
  %vm211 = vcmp.ge.f32.partialorder %v164, 0.0
  %vm212 = vcmp.ge.f32.partialorder %v169, 0.0
  %vm213 = vcmp.ge.f32.partialorder %v174, 0.0
  %vm214 = vcmp.ge.f32.partialorder %v179, 0.0
  %vm215 = vcmp.ge.f32.partialorder %v184, 0.0
  %vm216 = vcmp.ge.f32.partialorder %v189, 0.0
  %vm217 = vcmp.ge.f32.partialorder %v194, 0.0
  %vm218 = vcmp.ge.f32.partialorder %v199, 0.0
  %v219 = vstv %s202
  %v220 = vmul.f32 %v219, %v124
  %v221 = vmul.f32 %v219, %v129
  %v222 = vmul.f32 %v219, %v134
  %v223 = vmul.f32 %v219, %v139
  %v224 = vmul.f32 %v219, %v144
  %v225 = vmul.f32 %v219, %v149
  %v226 = vmul.f32 %v219, %v154
  %v227 = vmul.f32 %v219, %v159
  %v228 = vmul.f32 %v219, %v164
  %v229 = vmul.f32 %v219, %v169
  %v230 = vmul.f32 %v219, %v174
  %v231 = vmul.f32 %v219, %v179
  %v232 = vmul.f32 %v219, %v184
  %v233 = vmul.f32 %v219, %v189
  %v234 = vmul.f32 %v219, %v194
  %v235 = vmul.f32 %v219, %v199
  %v236 = vsel %vm203, %v124, %v220
  %v237 = vsel %vm204, %v129, %v221
  %v238 = vsel %vm205, %v134, %v222
  %v239 = vsel %vm206, %v139, %v223
  %v240 = vsel %vm207, %v144, %v224
  %v241 = vsel %vm208, %v149, %v225
  %v242 = vsel %vm209, %v154, %v226
  %v243 = vsel %vm210, %v159, %v227
  %v244 = vsel %vm211, %v164, %v228
  %v245 = vsel %vm212, %v169, %v229
  %v246 = vsel %vm213, %v174, %v230
  %v247 = vsel %vm214, %v179, %v231
  %v248 = vsel %vm215, %v184, %v232
  %v249 = vsel %vm216, %v189, %v233
  %v250 = vsel %vm217, %v194, %v234
  %v251 = vsel %vm218, %v199, %v235
  %252 = vst [vmem:[%s4] sm:$0xff] %v236
  %253 = vst [vmem:[%s4 + $0x8] sm:$0xff] %v237
  %254 = vst [vmem:[%s4 + $0x10] sm:$0xff] %v238
  %255 = vst [vmem:[%s4 + $0x18] sm:$0xff] %v239
  %256 = vst [vmem:[%s4 + $0x20] sm:$0xff] %v240
  %257 = vst [vmem:[%s4 + $0x28] sm:$0xff] %v241
  %258 = vst [vmem:[%s4 + $0x30] sm:$0xff] %v242
  %259 = vst [vmem:[%s4 + $0x38] sm:$0xff] %v243
  %260 = vst [vmem:[%s4 + $0x40] sm:$0xff] %v244
  %261 = vst [vmem:[%s4 + $0x48] sm:$0xff] %v245
  %262 = vst [vmem:[%s4 + $0x50] sm:$0xff] %v246
  %263 = vst [vmem:[%s4 + $0x58] sm:$0xff] %v247
  %264 = vst [vmem:[%s4 + $0x60] sm:$0xff] %v248
  %265 = vst [vmem:[%s4 + $0x68] sm:$0xff] %v249
  %266 = vst [vmem:[%s4 + $0x70] sm:$0xff] %v250
  %267 = vst [vmem:[%s4 + $0x78] sm:$0xff] %v251
  // Predicated region
  $region18: #{run.5} parent=0 // pred_check
    _
  $region19: #{run.5} parent=0 // pred_check_branch
    %269 = sbr.rel (0) target = $region21
  $region20: #{run.5} parent=0 // pred_region
    _
  $region21: #{run.5} parent=0 // pred_fallthru
    _
  // Predicated region
  $region22: #{run.5} parent=0 // pred_check
    _
  $region23: #{run.5} parent=0 // pred_check_branch
    %271 = sbr.rel (0) target = $region25
  $region24: #{run.5} parent=0 // pred_region
    _
  $region25: #{run.5} parent=0 // pred_fallthru
    _

// kernel: run.3
$region0: #{run.3}
  #allocation0 [shape = 'u32[]', space=smem, size = 0x4, offset = 0x4, fixed_abs, tag = 'smem constant byte address 0x4 - core index']
  #allocation1 [shape = 'u32[144,128]{1,0:T(1,128)}', space=vmem, size = 0x12000, scoped, tag = 'internal scratch']
  #allocation2 [shape = 'f32[128,128]{1,0:T(8,128)}', space=vmem, size = 0x10000, scoped, tag = 'scratch operand']
  #allocation3 [shape = 'f32[1]{0:T(128)S(6)}', space=smem, size = 0x200, scoped, tag = 'scoped memory for run.3']
  %s0 = inlined_call_operand.hbm [shape: f32[128,128], index: 0, kind: input, shape index: {}]
  %s1 = inlined_call_operand.vmem [shape: f32[128,128], index: 1, kind: input, shape index: {}]
  %s2 = inlined_call_operand.vmem [shape: f32[128,128], index: 2, kind: input, shape index: {}]
  %s3 = inlined_call_operand.vmem [shape: f32[1,128], index: 3, kind: input, shape index: {}]
  %s4 = inlined_call_operand.vmem [shape: f32[128,128], index: 4, kind: input, shape index: {}]
  %s5 = inlined_call_operand.vmem [shape: f32[1,128], index: 5, kind: input, shape index: {}]
  %s6 = inlined_call_operand.vmem [shape: f32[1,128], index: 6, kind: input, shape index: {}]
  %s7 = inlined_call_operand.vmem [shape: f32[1,128], index: 7, kind: input, shape index: {}]
  %s8 = inlined_call_operand.<no memory space> [shape: f32[1], index: 8, kind: input, shape index: {}]
  %s9 = inlined_call_operand.vmem [shape: f32[128,128], index: 9, kind: output, shape index: {}]
  %s10 = sld [smem:[#allocation0]]
  $region58: #{run.3} parent=0
    _
  %s12 = ssub.s32 1, %s10
  %s13 = scalar_select 0, %s12, %s10
  %14 = sst [smem:[#allocation3]] %s8
  $region1: #{run.3} parent=0
    #allocation4 [shape = 'u8[65536]{0}', space=vmem, size = 0x10000, scoped, tag = 'input window, operand 0, single buffered']
    #allocation5 [shape = 's32[1]{0}', space=sflag, size = 0x4, scoped, tag = 'scoped memory for run.3']
    %15 = vsyncpa [#allocation5], 0
    // Predicated region
    $region2: #{run.3} parent=1 // pred_check
      _
    $region3: #{run.3} parent=1 // pred_check_branch
      %17 = sbr.rel (0) target = $region5
    $region4: #{run.3} parent=1 // pred_region
      %s19 = ssub.s32 2048, 2048
      %20 = vsyncadd [#allocation5], %s19
      %s21 = sshll.u32 [#allocation4], 4
      %s22 = int_to_ptr.vmem [resolvable:$true] %s21
      %27 = dma.hbm_to_vmem [thread:$0]  %s0, 2048, %s22, [#allocation5], 128, 128, 8
    $region5: #{run.3} parent=1 // pred_fallthru
      _
    // Predicated region
    $region6: #{run.3} parent=1 // pred_check
      _
    $region7: #{run.3} parent=1 // pred_check_branch
      %29 = sbr.rel (0) target = $region9
    $region8: #{run.3} parent=1 // pred_region
      _
    $region9: #{run.3} parent=1 // pred_fallthru
      _
    // Predicated region
    $region10: #{run.3} parent=1 // pred_check
      _
    $region11: #{run.3} parent=1 // pred_check_branch
      %31 = sbr.rel (0) target = $region13
    $region12: #{run.3} parent=1 // pred_region
      _
    $region13: #{run.3} parent=1 // pred_fallthru
      _
    // Predicated region
    $region14: #{run.3} parent=1 // pred_check
      _
    $region15: #{run.3} parent=1 // pred_check_branch
      %33 = sbr.rel (0) target = $region17
    $region16: #{run.3} parent=1 // pred_region
      _
    $region17: #{run.3} parent=1 // pred_fallthru
      _
    // Predicated region
    $region18: #{run.3} parent=1 // pred_check
      _
    $region19: #{run.3} parent=1 // pred_check_branch
      %35 = sbr.rel (0) target = $region21
    $region20: #{run.3} parent=1 // pred_region
      _
    $region21: #{run.3} parent=1 // pred_fallthru
      _
    // Predicated region
    $region22: #{run.3} parent=1 // pred_check
      _
    $region23: #{run.3} parent=1 // pred_check_branch
      %37 = sbr.rel (0) target = $region25
    $region24: #{run.3} parent=1 // pred_region
      _
    $region25: #{run.3} parent=1 // pred_fallthru
      _
    // Predicated region
    $region26: #{run.3} parent=1 // pred_check
      _
    $region27: #{run.3} parent=1 // pred_check_branch
      %39 = sbr.rel (0) target = $region29
    $region28: #{run.3} parent=1 // pred_region
      _
    $region29: #{run.3} parent=1 // pred_fallthru
      _
    // Predicated region
    $region30: #{run.3} parent=1 // pred_check
      _
    $region31: #{run.3} parent=1 // pred_check_branch
      %41 = sbr.rel (0) target = $region33
    $region32: #{run.3} parent=1 // pred_region
      _
    $region33: #{run.3} parent=1 // pred_fallthru
      _
    // Predicated region
    $region34: #{run.3} parent=1 // pred_check
      _
    $region35: #{run.3} parent=1 // pred_check_branch
      %43 = sbr.rel (0) target = $region37
    $region36: #{run.3} parent=1 // pred_region
      _
    $region37: #{run.3} parent=1 // pred_fallthru
      _
    // Predicated region
    $region38: #{run.3} parent=1 // pred_check
      _
    $region39: #{run.3} parent=1 // pred_check_branch
      %45 = sbr.rel (0) target = $region41
    $region40: #{run.3} parent=1 // pred_region
      %46 = dma.done [#allocation5], 2048
    $region41: #{run.3} parent=1 // pred_fallthru
      _
    %p47 = scmp.eq.s32.totalorder 0, 0
    // Predicated region
    $region42: #{run.3} parent=1 // pred_check
      %p48 = pneg %p47
    $region43: #{run.3} parent=1 // pred_check_branch
      %50 = sbr.rel (%p48) target = $region45
    $region44: #{run.3} parent=1 // pred_region
      %51 = vst [vmem:[#allocation2] sm:$0xff] 0.0
      %52 = vst [vmem:[#allocation2 + $0x8] sm:$0xff] 0.0
      %53 = vst [vmem:[#allocation2 + $0x10] sm:$0xff] 0.0
      %54 = vst [vmem:[#allocation2 + $0x18] sm:$0xff] 0.0
      %55 = vst [vmem:[#allocation2 + $0x20] sm:$0xff] 0.0
      %56 = vst [vmem:[#allocation2 + $0x28] sm:$0xff] 0.0
      %57 = vst [vmem:[#allocation2 + $0x30] sm:$0xff] 0.0
      %58 = vst [vmem:[#allocation2 + $0x38] sm:$0xff] 0.0
      %59 = vst [vmem:[#allocation2 + $0x40] sm:$0xff] 0.0
      %60 = vst [vmem:[#allocation2 + $0x48] sm:$0xff] 0.0
      %61 = vst [vmem:[#allocation2 + $0x50] sm:$0xff] 0.0
      %62 = vst [vmem:[#allocation2 + $0x58] sm:$0xff] 0.0
      %63 = vst [vmem:[#allocation2 + $0x60] sm:$0xff] 0.0
      %64 = vst [vmem:[#allocation2 + $0x68] sm:$0xff] 0.0
      %65 = vst [vmem:[#allocation2 + $0x70] sm:$0xff] 0.0
      %66 = vst [vmem:[#allocation2 + $0x78] sm:$0xff] 0.0
    $region45: #{run.3} parent=1 // pred_fallthru
      _
    %v67 = vld [vmem:[#allocation2] sm:$0xff]
    %v68 = vld [vmem:[#allocation2 + $0x8] sm:$0xff]
    %v69 = vld [vmem:[#allocation2 + $0x10] sm:$0xff]
    %v70 = vld [vmem:[#allocation2 + $0x18] sm:$0xff]
    %v71 = vld [vmem:[#allocation2 + $0x20] sm:$0xff]
    %v72 = vld [vmem:[#allocation2 + $0x28] sm:$0xff]
    %v73 = vld [vmem:[#allocation2 + $0x30] sm:$0xff]
    %v74 = vld [vmem:[#allocation2 + $0x38] sm:$0xff]
    %v75 = vld [vmem:[#allocation2 + $0x40] sm:$0xff]
    %v76 = vld [vmem:[#allocation2 + $0x48] sm:$0xff]
    %v77 = vld [vmem:[#allocation2 + $0x50] sm:$0xff]
    %v78 = vld [vmem:[#allocation2 + $0x58] sm:$0xff]
    %v79 = vld [vmem:[#allocation2 + $0x60] sm:$0xff]
    %v80 = vld [vmem:[#allocation2 + $0x68] sm:$0xff]
    %v81 = vld [vmem:[#allocation2 + $0x70] sm:$0xff]
    %v82 = vld [vmem:[#allocation2 + $0x78] sm:$0xff]
    %v83 = vld [vmem:[#allocation4] sm:$0xff]
    %v84 = vld [vmem:[#allocation4 + $0x8] sm:$0xff]
    %v85 = vld [vmem:[#allocation4 + $0x10] sm:$0xff]
    %v86 = vld [vmem:[#allocation4 + $0x18] sm:$0xff]
    %v87 = vld [vmem:[#allocation4 + $0x20] sm:$0xff]
    %v88 = vld [vmem:[#allocation4 + $0x28] sm:$0xff]
    %v89 = vld [vmem:[#allocation4 + $0x30] sm:$0xff]
    %v90 = vld [vmem:[#allocation4 + $0x38] sm:$0xff]
    %v91 = vld [vmem:[#allocation4 + $0x40] sm:$0xff]
    %v92 = vld [vmem:[#allocation4 + $0x48] sm:$0xff]
    %v93 = vld [vmem:[#allocation4 + $0x50] sm:$0xff]
    %v94 = vld [vmem:[#allocation4 + $0x58] sm:$0xff]
    %v95 = vld [vmem:[#allocation4 + $0x60] sm:$0xff]
    %v96 = vld [vmem:[#allocation4 + $0x68] sm:$0xff]
    %v97 = vld [vmem:[#allocation4 + $0x70] sm:$0xff]
    %v98 = vld [vmem:[#allocation4 + $0x78] sm:$0xff]
    %v99 = vld [vmem:[%s1] sm:$0xff]
    %v100 = vld [vmem:[%s1 + $0x8] sm:$0xff]
    %v101 = vld [vmem:[%s1 + $0x10] sm:$0xff]
    %v102 = vld [vmem:[%s1 + $0x18] sm:$0xff]
    %v103 = vld [vmem:[%s1 + $0x20] sm:$0xff]
    %v104 = vld [vmem:[%s1 + $0x28] sm:$0xff]
    %v105 = vld [vmem:[%s1 + $0x30] sm:$0xff]
    %v106 = vld [vmem:[%s1 + $0x38] sm:$0xff]
    %v107 = vld [vmem:[%s1 + $0x40] sm:$0xff]
    %v108 = vld [vmem:[%s1 + $0x48] sm:$0xff]
    %v109 = vld [vmem:[%s1 + $0x50] sm:$0xff]
    %v110 = vld [vmem:[%s1 + $0x58] sm:$0xff]
    %v111 = vld [vmem:[%s1 + $0x60] sm:$0xff]
    %v112 = vld [vmem:[%s1 + $0x68] sm:$0xff]
    %v113 = vld [vmem:[%s1 + $0x70] sm:$0xff]
    %v114 = vld [vmem:[%s1 + $0x78] sm:$0xff]
    %115 = vmatprep.subr.mxu0 0.0
    %116 = vmatpush1.msra.mxu0 %v99
    %117 = vmatprep.subr.mxu0 0.0
    %118 = vmatpush1.msra.mxu0 %v100
    %119 = vmatprep.subr.mxu0 0.0
    %120 = vmatpush1.msra.mxu0 %v101
    %121 = vmatprep.subr.mxu0 0.0
    %122 = vmatpush1.msra.mxu0 %v102
    %123 = vmatprep.subr.mxu0 0.0
    %124 = vmatpush1.msra.mxu0 %v103
    %125 = vmatprep.subr.mxu0 0.0
    %126 = vmatpush1.msra.mxu0 %v104
    %127 = vmatprep.subr.mxu0 0.0
    %128 = vmatpush1.msra.mxu0 %v105
    %129 = vmatprep.subr.mxu0 0.0
    %130 = vmatpush1.msra.mxu0 %v106
    %131 = vmatprep.subr.mxu0 0.0
    %132 = vmatpush1.msra.mxu0 %v107
    %133 = vmatprep.subr.mxu0 0.0
    %134 = vmatpush1.msra.mxu0 %v108
    %135 = vmatprep.subr.mxu0 0.0
    %136 = vmatpush1.msra.mxu0 %v109
    %137 = vmatprep.subr.mxu0 0.0
    %138 = vmatpush1.msra.mxu0 %v110
    %139 = vmatprep.subr.mxu0 0.0
    %140 = vmatpush1.msra.mxu0 %v111
    %141 = vmatprep.subr.mxu0 0.0
    %142 = vmatpush1.msra.mxu0 %v112
    %143 = vmatprep.subr.mxu0 0.0
    %144 = vmatpush1.msra.mxu0 %v113
    %145 = vmatprep.subr.mxu0 0.0
    %146 = vmatpush1.msra.mxu0 %v114
    %147 = vmatprep.subr.mxu0 0.0
    %148 = vmatpush1.msra.mxu0 0.0
    %149 = vmatprep.subr.mxu0 0.0
    %150 = vmatpush1.msra.mxu0 0.0
    %151 = vmatprep.subr.mxu0 0.0
    %152 = vmatpush1.msra.mxu0 0.0
    %153 = vmatprep.subr.mxu0 0.0
    %154 = vmatpush1.msra.mxu0 0.0
    %155 = vmatprep.subr.mxu0 0.0
    %156 = vmatpush1.msra.mxu0 0.0
    %157 = vmatprep.subr.mxu0 0.0
    %158 = vmatpush1.msra.mxu0 0.0
    %159 = vmatprep.subr.mxu0 0.0
    %160 = vmatpush1.msra.mxu0 0.0
    %161 = vmatprep.subr.mxu0 0.0
    %162 = vmatpush1.msra.mxu0 0.0
    %163 = vmatprep.subr.mxu0 0.0
    %164 = vmatpush1.msra.mxu0 0.0
    %165 = vmatprep.subr.mxu0 0.0
    %166 = vmatpush1.msra.mxu0 0.0
    %167 = vmatprep.subr.mxu0 0.0
    %168 = vmatpush1.msra.mxu0 0.0
    %169 = vmatprep.subr.mxu0 0.0
    %170 = vmatpush1.msra.mxu0 0.0
    %171 = vmatprep.subr.mxu0 0.0
    %172 = vmatpush1.msra.mxu0 0.0
    %173 = vmatprep.subr.mxu0 0.0
    %174 = vmatpush1.msra.mxu0 0.0
    %175 = vmatprep.subr.mxu0 0.0
    %176 = vmatpush1.msra.mxu0 0.0
    %177 = vmatprep.subr.mxu0 0.0
    %178 = vmatpush1.msra.mxu0 0.0
    %179 = vmatprep.mubr.f32.mxu0 0.0
    %180 = vmatmul.mubr.f32.gmra.mrb[0].mxu0 %v83
    %v181 = vpop.f32.mrb[0].mxu0
    %v182 = vadd.f32 0.0, %v181
    %v183 = vpop.f32.mrb[0].mxu0
    %184 = vmatprep.mubr.f32.mxu0 0.0
    %185 = vmatmul.mubr.f32.gmra.mrb[0].mxu0 %v84
    %v186 = vpop.f32.mrb[0].mxu0
    %v187 = vadd.f32 0.0, %v186
    %v188 = vpop.f32.mrb[0].mxu0
    %189 = vmatprep.mubr.f32.mxu0 0.0
    %190 = vmatmul.mubr.f32.gmra.mrb[0].mxu0 %v85
    %v191 = vpop.f32.mrb[0].mxu0
    %v192 = vadd.f32 0.0, %v191
    %v193 = vpop.f32.mrb[0].mxu0
    %194 = vmatprep.mubr.f32.mxu0 0.0
    %195 = vmatmul.mubr.f32.gmra.mrb[0].mxu0 %v86
    %v196 = vpop.f32.mrb[0].mxu0
    %v197 = vadd.f32 0.0, %v196
    %v198 = vpop.f32.mrb[0].mxu0
    %199 = vmatprep.mubr.f32.mxu0 0.0
    %200 = vmatmul.mubr.f32.gmra.mrb[0].mxu0 %v87
    %v201 = vpop.f32.mrb[0].mxu0
    %v202 = vadd.f32 0.0, %v201
    %v203 = vpop.f32.mrb[0].mxu0
    %204 = vmatprep.mubr.f32.mxu0 0.0
    %205 = vmatmul.mubr.f32.gmra.mrb[0].mxu0 %v88
    %v206 = vpop.f32.mrb[0].mxu0
    %v207 = vadd.f32 0.0, %v206
    %v208 = vpop.f32.mrb[0].mxu0
    %209 = vmatprep.mubr.f32.mxu0 0.0
    %210 = vmatmul.mubr.f32.gmra.mrb[0].mxu0 %v89
    %v211 = vpop.f32.mrb[0].mxu0
    %v212 = vadd.f32 0.0, %v211
    %v213 = vpop.f32.mrb[0].mxu0
    %214 = vmatprep.mubr.f32.mxu0 0.0
    %215 = vmatmul.mubr.f32.gmra.mrb[0].mxu0 %v90
    %v216 = vpop.f32.mrb[0].mxu0
    %v217 = vadd.f32 0.0, %v216
    %v218 = vpop.f32.mrb[0].mxu0
    %219 = vmatprep.mubr.f32.mxu0 0.0
    %220 = vmatmul.mubr.f32.gmra.mrb[0].mxu0 %v91
    %v221 = vpop.f32.mrb[0].mxu0
    %v222 = vadd.f32 0.0, %v221
    %v223 = vpop.f32.mrb[0].mxu0
    %224 = vmatprep.mubr.f32.mxu0 0.0
    %225 = vmatmul.mubr.f32.gmra.mrb[0].mxu0 %v92
    %v226 = vpop.f32.mrb[0].mxu0
    %v227 = vadd.f32 0.0, %v226
    %v228 = vpop.f32.mrb[0].mxu0
    %229 = vmatprep.mubr.f32.mxu0 0.0
    %230 = vmatmul.mubr.f32.gmra.mrb[0].mxu0 %v93
    %v231 = vpop.f32.mrb[0].mxu0
    %v232 = vadd.f32 0.0, %v231
    %v233 = vpop.f32.mrb[0].mxu0
    %234 = vmatprep.mubr.f32.mxu0 0.0
    %235 = vmatmul.mubr.f32.gmra.mrb[0].mxu0 %v94
    %v236 = vpop.f32.mrb[0].mxu0
    %v237 = vadd.f32 0.0, %v236
    %v238 = vpop.f32.mrb[0].mxu0
    %239 = vmatprep.mubr.f32.mxu0 0.0
    %240 = vmatmul.mubr.f32.gmra.mrb[0].mxu0 %v95
    %v241 = vpop.f32.mrb[0].mxu0
    %v242 = vadd.f32 0.0, %v241
    %v243 = vpop.f32.mrb[0].mxu0
    %244 = vmatprep.mubr.f32.mxu0 0.0
    %245 = vmatmul.mubr.f32.gmra.mrb[0].mxu0 %v96
    %v246 = vpop.f32.mrb[0].mxu0
    %v247 = vadd.f32 0.0, %v246
    %v248 = vpop.f32.mrb[0].mxu0
    %249 = vmatprep.mubr.f32.mxu0 0.0
    %250 = vmatmul.mubr.f32.gmra.mrb[0].mxu0 %v97
    %v251 = vpop.f32.mrb[0].mxu0
    %v252 = vadd.f32 0.0, %v251
    %v253 = vpop.f32.mrb[0].mxu0
    %254 = vmatprep.mubr.f32.mxu0 0.0
    %255 = vmatmul.mubr.f32.gmra.mrb[0].mxu0 %v98
    %v256 = vpop.f32.mrb[0].mxu0
    %v257 = vadd.f32 0.0, %v256
    %v258 = vpop.f32.mrb[0].mxu0
    %259 = vdwg.mxu0
    %v260 = vadd.f32 %v67, %v182
    %v261 = vadd.f32 %v68, %v187
    %v262 = vadd.f32 %v69, %v192
    %v263 = vadd.f32 %v70, %v197
    %v264 = vadd.f32 %v71, %v202
    %v265 = vadd.f32 %v72, %v207
    %v266 = vadd.f32 %v73, %v212
    %v267 = vadd.f32 %v74, %v217
    %v268 = vadd.f32 %v75, %v222
    %v269 = vadd.f32 %v76, %v227
    %v270 = vadd.f32 %v77, %v232
    %v271 = vadd.f32 %v78, %v237
    %v272 = vadd.f32 %v79, %v242
    %v273 = vadd.f32 %v80, %v247
    %v274 = vadd.f32 %v81, %v252
    %v275 = vadd.f32 %v82, %v257
    %276 = vst [vmem:[#allocation2] sm:$0xff] %v260
    %277 = vst [vmem:[#allocation2 + $0x8] sm:$0xff] %v261
    %278 = vst [vmem:[#allocation2 + $0x10] sm:$0xff] %v262
    %279 = vst [vmem:[#allocation2 + $0x18] sm:$0xff] %v263
    %280 = vst [vmem:[#allocation2 + $0x20] sm:$0xff] %v264
    %281 = vst [vmem:[#allocation2 + $0x28] sm:$0xff] %v265
    %282 = vst [vmem:[#allocation2 + $0x30] sm:$0xff] %v266
    %283 = vst [vmem:[#allocation2 + $0x38] sm:$0xff] %v267
    %284 = vst [vmem:[#allocation2 + $0x40] sm:$0xff] %v268
    %285 = vst [vmem:[#allocation2 + $0x48] sm:$0xff] %v269
    %286 = vst [vmem:[#allocation2 + $0x50] sm:$0xff] %v270
    %287 = vst [vmem:[#allocation2 + $0x58] sm:$0xff] %v271
    %288 = vst [vmem:[#allocation2 + $0x60] sm:$0xff] %v272
    %289 = vst [vmem:[#allocation2 + $0x68] sm:$0xff] %v273
    %290 = vst [vmem:[#allocation2 + $0x70] sm:$0xff] %v274
    %291 = vst [vmem:[#allocation2 + $0x78] sm:$0xff] %v275
    // Predicated region
    $region46: #{run.3} parent=1 // pred_check
      %p292 = pneg %p47
    $region47: #{run.3} parent=1 // pred_check_branch
      %294 = sbr.rel (%p292) target = $region49
    $region48: #{run.3} parent=1 // pred_region
      %v295 = vld [vmem:[#allocation2] sm:$0xff]
      %v296 = vld [vmem:[#allocation2 + $0x8] sm:$0xff]
      %v297 = vld [vmem:[#allocation2 + $0x10] sm:$0xff]
      %v298 = vld [vmem:[#allocation2 + $0x18] sm:$0xff]
      %v299 = vld [vmem:[#allocation2 + $0x20] sm:$0xff]
      %v300 = vld [vmem:[#allocation2 + $0x28] sm:$0xff]
      %v301 = vld [vmem:[#allocation2 + $0x30] sm:$0xff]
      %v302 = vld [vmem:[#allocation2 + $0x38] sm:$0xff]
      %v303 = vld [vmem:[#allocation2 + $0x40] sm:$0xff]
      %v304 = vld [vmem:[#allocation2 + $0x48] sm:$0xff]
      %v305 = vld [vmem:[#allocation2 + $0x50] sm:$0xff]
      %v306 = vld [vmem:[#allocation2 + $0x58] sm:$0xff]
      %v307 = vld [vmem:[#allocation2 + $0x60] sm:$0xff]
      %v308 = vld [vmem:[#allocation2 + $0x68] sm:$0xff]
      %v309 = vld [vmem:[#allocation2 + $0x70] sm:$0xff]
      %v310 = vld [vmem:[#allocation2 + $0x78] sm:$0xff]
      %v311 = vld [vmem:[%s2] sm:$0xff]
      %v312 = vld [vmem:[%s2 + $0x8] sm:$0xff]
      %v313 = vld [vmem:[%s2 + $0x10] sm:$0xff]
      %v314 = vld [vmem:[%s2 + $0x18] sm:$0xff]
      %v315 = vld [vmem:[%s2 + $0x20] sm:$0xff]
      %v316 = vld [vmem:[%s2 + $0x28] sm:$0xff]
      %v317 = vld [vmem:[%s2 + $0x30] sm:$0xff]
      %v318 = vld [vmem:[%s2 + $0x38] sm:$0xff]
      %v319 = vld [vmem:[%s2 + $0x40] sm:$0xff]
      %v320 = vld [vmem:[%s2 + $0x48] sm:$0xff]
      %v321 = vld [vmem:[%s2 + $0x50] sm:$0xff]
      %v322 = vld [vmem:[%s2 + $0x58] sm:$0xff]
      %v323 = vld [vmem:[%s2 + $0x60] sm:$0xff]
      %v324 = vld [vmem:[%s2 + $0x68] sm:$0xff]
      %v325 = vld [vmem:[%s2 + $0x70] sm:$0xff]
      %v326 = vld [vmem:[%s2 + $0x78] sm:$0xff]
      %v327 = vld [vmem:[%s3] sm:$0x1]
      %v329 = vlaneseq
      %v330 = vshrl.u32 %v329, 7
      %v331 = vsub.s32 0, %v330
      %v332 = vrot.slane %v327, %v331
      %334 = vmatprep.subr.mxu0 0.0
      %335 = vmatpush1.msra.mxu0 %v311
      %336 = vmatprep.subr.mxu0 0.0
      %337 = vmatpush1.msra.mxu0 %v312
      %338 = vmatprep.subr.mxu0 0.0
      %339 = vmatpush1.msra.mxu0 %v313
      %340 = vmatprep.subr.mxu0 0.0
      %341 = vmatpush1.msra.mxu0 %v314
      %342 = vmatprep.subr.mxu0 0.0
      %343 = vmatpush1.msra.mxu0 %v315
      %344 = vmatprep.subr.mxu0 0.0
      %345 = vmatpush1.msra.mxu0 %v316
      %346 = vmatprep.subr.mxu0 0.0
      %347 = vmatpush1.msra.mxu0 %v317
      %348 = vmatprep.subr.mxu0 0.0
      %349 = vmatpush1.msra.mxu0 %v318
      %350 = vmatprep.subr.mxu0 0.0
      %351 = vmatpush1.msra.mxu0 %v319
      %352 = vmatprep.subr.mxu0 0.0
      %353 = vmatpush1.msra.mxu0 %v320
      %354 = vmatprep.subr.mxu0 0.0
      %355 = vmatpush1.msra.mxu0 %v321
      %356 = vmatprep.subr.mxu0 0.0
      %357 = vmatpush1.msra.mxu0 %v322
      %358 = vmatprep.subr.mxu0 0.0
      %359 = vmatpush1.msra.mxu0 %v323
      %360 = vmatprep.subr.mxu0 0.0
      %361 = vmatpush1.msra.mxu0 %v324
      %362 = vmatprep.subr.mxu0 0.0
      %363 = vmatpush1.msra.mxu0 %v325
      %364 = vmatprep.subr.mxu0 0.0
      %365 = vmatpush1.msra.mxu0 %v326
      %366 = vmatprep.subr.mxu0 0.0
      %367 = vmatpush1.msra.mxu0 0.0
      %368 = vmatprep.subr.mxu0 0.0
      %369 = vmatpush1.msra.mxu0 0.0
      %370 = vmatprep.subr.mxu0 0.0
      %371 = vmatpush1.msra.mxu0 0.0
      %372 = vmatprep.subr.mxu0 0.0
      %373 = vmatpush1.msra.mxu0 0.0
      %374 = vmatprep.subr.mxu0 0.0
      %375 = vmatpush1.msra.mxu0 0.0
      %376 = vmatprep.subr.mxu0 0.0
      %377 = vmatpush1.msra.mxu0 0.0
      %378 = vmatprep.subr.mxu0 0.0
      %379 = vmatpush1.msra.mxu0 0.0
      %380 = vmatprep.subr.mxu0 0.0
      %381 = vmatpush1.msra.mxu0 0.0
      %382 = vmatprep.subr.mxu0 0.0
      %383 = vmatpush1.msra.mxu0 0.0
      %384 = vmatprep.subr.mxu0 0.0
      %385 = vmatpush1.msra.mxu0 0.0
      %386 = vmatprep.subr.mxu0 0.0
      %387 = vmatpush1.msra.mxu0 0.0
      %388 = vmatprep.subr.mxu0 0.0
      %389 = vmatpush1.msra.mxu0 0.0
      %390 = vmatprep.subr.mxu0 0.0
      %391 = vmatpush1.msra.mxu0 0.0
      %392 = vmatprep.subr.mxu0 0.0
      %393 = vmatpush1.msra.mxu0 0.0
      %394 = vmatprep.subr.mxu0 0.0
      %395 = vmatpush1.msra.mxu0 0.0
      %396 = vmatprep.subr.mxu0 0.0
      %397 = vmatpush1.msra.mxu0 0.0
      %398 = vmatprep.mubr.f32.mxu0 0.0
      %399 = vmatmul.mubr.f32.gmra.mrb[0].mxu0 %v295
      %v400 = vpop.f32.mrb[0].mxu0
      %v401 = vadd.f32 %v332, %v400
      %v402 = vpop.f32.mrb[0].mxu0
      %403 = vmatprep.mubr.f32.mxu0 0.0
      %404 = vmatmul.mubr.f32.gmra.mrb[0].mxu0 %v296
      %v405 = vpop.f32.mrb[0].mxu0
      %v406 = vadd.f32 %v332, %v405
      %v407 = vpop.f32.mrb[0].mxu0
      %408 = vmatprep.mubr.f32.mxu0 0.0
      %409 = vmatmul.mubr.f32.gmra.mrb[0].mxu0 %v297
      %v410 = vpop.f32.mrb[0].mxu0
      %v411 = vadd.f32 %v332, %v410
      %v412 = vpop.f32.mrb[0].mxu0
      %413 = vmatprep.mubr.f32.mxu0 0.0
      %414 = vmatmul.mubr.f32.gmra.mrb[0].mxu0 %v298
      %v415 = vpop.f32.mrb[0].mxu0
      %v416 = vadd.f32 %v332, %v415
      %v417 = vpop.f32.mrb[0].mxu0
      %418 = vmatprep.mubr.f32.mxu0 0.0
      %419 = vmatmul.mubr.f32.gmra.mrb[0].mxu0 %v299
      %v420 = vpop.f32.mrb[0].mxu0
      %v421 = vadd.f32 %v332, %v420
      %v422 = vpop.f32.mrb[0].mxu0
      %423 = vmatprep.mubr.f32.mxu0 0.0
      %424 = vmatmul.mubr.f32.gmra.mrb[0].mxu0 %v300
      %v425 = vpop.f32.mrb[0].mxu0
      %v426 = vadd.f32 %v332, %v425
      %v427 = vpop.f32.mrb[0].mxu0
      %428 = vmatprep.mubr.f32.mxu0 0.0
      %429 = vmatmul.mubr.f32.gmra.mrb[0].mxu0 %v301
      %v430 = vpop.f32.mrb[0].mxu0
      %v431 = vadd.f32 %v332, %v430
      %v432 = vpop.f32.mrb[0].mxu0
      %433 = vmatprep.mubr.f32.mxu0 0.0
      %434 = vmatmul.mubr.f32.gmra.mrb[0].mxu0 %v302
      %v435 = vpop.f32.mrb[0].mxu0
      %v436 = vadd.f32 %v332, %v435
      %v437 = vpop.f32.mrb[0].mxu0
      %438 = vmatprep.mubr.f32.mxu0 0.0
      %439 = vmatmul.mubr.f32.gmra.mrb[0].mxu0 %v303
      %v440 = vpop.f32.mrb[0].mxu0
      %v441 = vadd.f32 %v332, %v440
      %v442 = vpop.f32.mrb[0].mxu0
      %443 = vmatprep.mubr.f32.mxu0 0.0
      %444 = vmatmul.mubr.f32.gmra.mrb[0].mxu0 %v304
      %v445 = vpop.f32.mrb[0].mxu0
      %v446 = vadd.f32 %v332, %v445
      %v447 = vpop.f32.mrb[0].mxu0
      %448 = vmatprep.mubr.f32.mxu0 0.0
      %449 = vmatmul.mubr.f32.gmra.mrb[0].mxu0 %v305
      %v450 = vpop.f32.mrb[0].mxu0
      %v451 = vadd.f32 %v332, %v450
      %v452 = vpop.f32.mrb[0].mxu0
      %453 = vmatprep.mubr.f32.mxu0 0.0
      %454 = vmatmul.mubr.f32.gmra.mrb[0].mxu0 %v306
      %v455 = vpop.f32.mrb[0].mxu0
      %v456 = vadd.f32 %v332, %v455
      %v457 = vpop.f32.mrb[0].mxu0
      %458 = vmatprep.mubr.f32.mxu0 0.0
      %459 = vmatmul.mubr.f32.gmra.mrb[0].mxu0 %v307
      %v460 = vpop.f32.mrb[0].mxu0
      %v461 = vadd.f32 %v332, %v460
      %v462 = vpop.f32.mrb[0].mxu0
      %463 = vmatprep.mubr.f32.mxu0 0.0
      %464 = vmatmul.mubr.f32.gmra.mrb[0].mxu0 %v308
      %v465 = vpop.f32.mrb[0].mxu0
      %v466 = vadd.f32 %v332, %v465
      %v467 = vpop.f32.mrb[0].mxu0
      %468 = vmatprep.mubr.f32.mxu0 0.0
      %469 = vmatmul.mubr.f32.gmra.mrb[0].mxu0 %v309
      %v470 = vpop.f32.mrb[0].mxu0
      %v471 = vadd.f32 %v332, %v470
      %v472 = vpop.f32.mrb[0].mxu0
      %473 = vmatprep.mubr.f32.mxu0 0.0
      %474 = vmatmul.mubr.f32.gmra.mrb[0].mxu0 %v310
      %v475 = vpop.f32.mrb[0].mxu0
      %v476 = vadd.f32 %v332, %v475
      %v477 = vpop.f32.mrb[0].mxu0
      %478 = vdwg.mxu0
      %v479 = vmax.f32 %v401, 0.0
      %v480 = vmax.f32 %v406, 0.0
      %v481 = vmax.f32 %v411, 0.0
      %v482 = vmax.f32 %v416, 0.0
      %v483 = vmax.f32 %v421, 0.0
      %v484 = vmax.f32 %v426, 0.0
      %v485 = vmax.f32 %v431, 0.0
      %v486 = vmax.f32 %v436, 0.0
      %v487 = vmax.f32 %v441, 0.0
      %v488 = vmax.f32 %v446, 0.0
      %v489 = vmax.f32 %v451, 0.0
      %v490 = vmax.f32 %v456, 0.0
      %v491 = vmax.f32 %v461, 0.0
      %v492 = vmax.f32 %v466, 0.0
      %v493 = vmax.f32 %v471, 0.0
      %v494 = vmax.f32 %v476, 0.0
      %v495 = vld [vmem:[%s4] sm:$0xff]
      %v496 = vld [vmem:[%s4 + $0x8] sm:$0xff]
      %v497 = vld [vmem:[%s4 + $0x10] sm:$0xff]
      %v498 = vld [vmem:[%s4 + $0x18] sm:$0xff]
      %v499 = vld [vmem:[%s4 + $0x20] sm:$0xff]
      %v500 = vld [vmem:[%s4 + $0x28] sm:$0xff]
      %v501 = vld [vmem:[%s4 + $0x30] sm:$0xff]
      %v502 = vld [vmem:[%s4 + $0x38] sm:$0xff]
      %v503 = vld [vmem:[%s4 + $0x40] sm:$0xff]
      %v504 = vld [vmem:[%s4 + $0x48] sm:$0xff]
      %v505 = vld [vmem:[%s4 + $0x50] sm:$0xff]
      %v506 = vld [vmem:[%s4 + $0x58] sm:$0xff]
      %v507 = vld [vmem:[%s4 + $0x60] sm:$0xff]
      %v508 = vld [vmem:[%s4 + $0x68] sm:$0xff]
      %v509 = vld [vmem:[%s4 + $0x70] sm:$0xff]
      %v510 = vld [vmem:[%s4 + $0x78] sm:$0xff]
      %v511 = vld [vmem:[%s5] sm:$0x1]
      %v513 = vlaneseq
      %v514 = vshrl.u32 %v513, 7
      %v515 = vsub.s32 0, %v514
      %v516 = vrot.slane %v511, %v515
      %518 = vmatprep.subr.mxu0 0.0
      %519 = vmatpush1.msra.mxu0 %v495
      %520 = vmatprep.subr.mxu0 0.0
      %521 = vmatpush1.msra.mxu0 %v496
      %522 = vmatprep.subr.mxu0 0.0
      %523 = vmatpush1.msra.mxu0 %v497
      %524 = vmatprep.subr.mxu0 0.0
      %525 = vmatpush1.msra.mxu0 %v498
      %526 = vmatprep.subr.mxu0 0.0
      %527 = vmatpush1.msra.mxu0 %v499
      %528 = vmatprep.subr.mxu0 0.0
      %529 = vmatpush1.msra.mxu0 %v500
      %530 = vmatprep.subr.mxu0 0.0
      %531 = vmatpush1.msra.mxu0 %v501
      %532 = vmatprep.subr.mxu0 0.0
      %533 = vmatpush1.msra.mxu0 %v502
      %534 = vmatprep.subr.mxu0 0.0
      %535 = vmatpush1.msra.mxu0 %v503
      %536 = vmatprep.subr.mxu0 0.0
      %537 = vmatpush1.msra.mxu0 %v504
      %538 = vmatprep.subr.mxu0 0.0
      %539 = vmatpush1.msra.mxu0 %v505
      %540 = vmatprep.subr.mxu0 0.0
      %541 = vmatpush1.msra.mxu0 %v506
      %542 = vmatprep.subr.mxu0 0.0
      %543 = vmatpush1.msra.mxu0 %v507
      %544 = vmatprep.subr.mxu0 0.0
      %545 = vmatpush1.msra.mxu0 %v508
      %546 = vmatprep.subr.mxu0 0.0
      %547 = vmatpush1.msra.mxu0 %v509
      %548 = vmatprep.subr.mxu0 0.0
      %549 = vmatpush1.msra.mxu0 %v510
      %550 = vmatprep.subr.mxu0 0.0
      %551 = vmatpush1.msra.mxu0 0.0
      %552 = vmatprep.subr.mxu0 0.0
      %553 = vmatpush1.msra.mxu0 0.0
      %554 = vmatprep.subr.mxu0 0.0
      %555 = vmatpush1.msra.mxu0 0.0
      %556 = vmatprep.subr.mxu0 0.0
      %557 = vmatpush1.msra.mxu0 0.0
      %558 = vmatprep.subr.mxu0 0.0
      %559 = vmatpush1.msra.mxu0 0.0
      %560 = vmatprep.subr.mxu0 0.0
      %561 = vmatpush1.msra.mxu0 0.0
      %562 = vmatprep.subr.mxu0 0.0
      %563 = vmatpush1.msra.mxu0 0.0
      %564 = vmatprep.subr.mxu0 0.0
      %565 = vmatpush1.msra.mxu0 0.0
      %566 = vmatprep.subr.mxu0 0.0
      %567 = vmatpush1.msra.mxu0 0.0
      %568 = vmatprep.subr.mxu0 0.0
      %569 = vmatpush1.msra.mxu0 0.0
      %570 = vmatprep.subr.mxu0 0.0
      %571 = vmatpush1.msra.mxu0 0.0
      %572 = vmatprep.subr.mxu0 0.0
      %573 = vmatpush1.msra.mxu0 0.0
      %574 = vmatprep.subr.mxu0 0.0
      %575 = vmatpush1.msra.mxu0 0.0
      %576 = vmatprep.subr.mxu0 0.0
      %577 = vmatpush1.msra.mxu0 0.0
      %578 = vmatprep.subr.mxu0 0.0
      %579 = vmatpush1.msra.mxu0 0.0
      %580 = vmatprep.subr.mxu0 0.0
      %581 = vmatpush1.msra.mxu0 0.0
      %582 = vmatprep.mubr.f32.mxu0 0.0
      %583 = vmatmul.mubr.f32.gmra.mrb[0].mxu0 %v479
      %v584 = vpop.f32.mrb[0].mxu0
      %v585 = vadd.f32 %v516, %v584
      %v586 = vpop.f32.mrb[0].mxu0
      %587 = vmatprep.mubr.f32.mxu0 0.0
      %588 = vmatmul.mubr.f32.gmra.mrb[0].mxu0 %v480
      %v589 = vpop.f32.mrb[0].mxu0
      %v590 = vadd.f32 %v516, %v589
      %v591 = vpop.f32.mrb[0].mxu0
      %592 = vmatprep.mubr.f32.mxu0 0.0
      %593 = vmatmul.mubr.f32.gmra.mrb[0].mxu0 %v481
      %v594 = vpop.f32.mrb[0].mxu0
      %v595 = vadd.f32 %v516, %v594
      %v596 = vpop.f32.mrb[0].mxu0
      %597 = vmatprep.mubr.f32.mxu0 0.0
      %598 = vmatmul.mubr.f32.gmra.mrb[0].mxu0 %v482
      %v599 = vpop.f32.mrb[0].mxu0
      %v600 = vadd.f32 %v516, %v599
      %v601 = vpop.f32.mrb[0].mxu0
      %602 = vmatprep.mubr.f32.mxu0 0.0
      %603 = vmatmul.mubr.f32.gmra.mrb[0].mxu0 %v483
      %v604 = vpop.f32.mrb[0].mxu0
      %v605 = vadd.f32 %v516, %v604
      %v606 = vpop.f32.mrb[0].mxu0
      %607 = vmatprep.mubr.f32.mxu0 0.0
      %608 = vmatmul.mubr.f32.gmra.mrb[0].mxu0 %v484
      %v609 = vpop.f32.mrb[0].mxu0
      %v610 = vadd.f32 %v516, %v609
      %v611 = vpop.f32.mrb[0].mxu0
      %612 = vmatprep.mubr.f32.mxu0 0.0
      %613 = vmatmul.mubr.f32.gmra.mrb[0].mxu0 %v485
      %v614 = vpop.f32.mrb[0].mxu0
      %v615 = vadd.f32 %v516, %v614
      %v616 = vpop.f32.mrb[0].mxu0
      %617 = vmatprep.mubr.f32.mxu0 0.0
      %618 = vmatmul.mubr.f32.gmra.mrb[0].mxu0 %v486
      %v619 = vpop.f32.mrb[0].mxu0
      %v620 = vadd.f32 %v516, %v619
      %v621 = vpop.f32.mrb[0].mxu0
      %622 = vmatprep.mubr.f32.mxu0 0.0
      %623 = vmatmul.mubr.f32.gmra.mrb[0].mxu0 %v487
      %v624 = vpop.f32.mrb[0].mxu0
      %v625 = vadd.f32 %v516, %v624
      %v626 = vpop.f32.mrb[0].mxu0
      %627 = vmatprep.mubr.f32.mxu0 0.0
      %628 = vmatmul.mubr.f32.gmra.mrb[0].mxu0 %v488
      %v629 = vpop.f32.mrb[0].mxu0
      %v630 = vadd.f32 %v516, %v629
      %v631 = vpop.f32.mrb[0].mxu0
      %632 = vmatprep.mubr.f32.mxu0 0.0
      %633 = vmatmul.mubr.f32.gmra.mrb[0].mxu0 %v489
      %v634 = vpop.f32.mrb[0].mxu0
      %v635 = vadd.f32 %v516, %v634
      %v636 = vpop.f32.mrb[0].mxu0
      %637 = vmatprep.mubr.f32.mxu0 0.0
      %638 = vmatmul.mubr.f32.gmra.mrb[0].mxu0 %v490
      %v639 = vpop.f32.mrb[0].mxu0
      %v640 = vadd.f32 %v516, %v639
      %v641 = vpop.f32.mrb[0].mxu0
      %642 = vmatprep.mubr.f32.mxu0 0.0
      %643 = vmatmul.mubr.f32.gmra.mrb[0].mxu0 %v491
      %v644 = vpop.f32.mrb[0].mxu0
      %v645 = vadd.f32 %v516, %v644
      %v646 = vpop.f32.mrb[0].mxu0
      %647 = vmatprep.mubr.f32.mxu0 0.0
      %648 = vmatmul.mubr.f32.gmra.mrb[0].mxu0 %v492
      %v649 = vpop.f32.mrb[0].mxu0
      %v650 = vadd.f32 %v516, %v649
      %v651 = vpop.f32.mrb[0].mxu0
      %652 = vmatprep.mubr.f32.mxu0 0.0
      %653 = vmatmul.mubr.f32.gmra.mrb[0].mxu0 %v493
      %v654 = vpop.f32.mrb[0].mxu0
      %v655 = vadd.f32 %v516, %v654
      %v656 = vpop.f32.mrb[0].mxu0
      %657 = vmatprep.mubr.f32.mxu0 0.0
      %658 = vmatmul.mubr.f32.gmra.mrb[0].mxu0 %v494
      %v659 = vpop.f32.mrb[0].mxu0
      %v660 = vadd.f32 %v516, %v659
      %v661 = vpop.f32.mrb[0].mxu0
      %662 = vdwg.mxu0
      %s663 = sld [smem:[#allocation3]]
      %vm664 = vcmp.ge.f32.partialorder %v585, 0.0
      %vm665 = vcmp.ge.f32.partialorder %v590, 0.0
      %vm666 = vcmp.ge.f32.partialorder %v595, 0.0
      %vm667 = vcmp.ge.f32.partialorder %v600, 0.0
      %vm668 = vcmp.ge.f32.partialorder %v605, 0.0
      %vm669 = vcmp.ge.f32.partialorder %v610, 0.0
      %vm670 = vcmp.ge.f32.partialorder %v615, 0.0
      %vm671 = vcmp.ge.f32.partialorder %v620, 0.0
      %vm672 = vcmp.ge.f32.partialorder %v625, 0.0
      %vm673 = vcmp.ge.f32.partialorder %v630, 0.0
      %vm674 = vcmp.ge.f32.partialorder %v635, 0.0
      %vm675 = vcmp.ge.f32.partialorder %v640, 0.0
      %vm676 = vcmp.ge.f32.partialorder %v645, 0.0
      %vm677 = vcmp.ge.f32.partialorder %v650, 0.0
      %vm678 = vcmp.ge.f32.partialorder %v655, 0.0
      %vm679 = vcmp.ge.f32.partialorder %v660, 0.0
      %v680 = vstv %s663
      %v681 = vmul.f32 %v680, %v585
      %v682 = vmul.f32 %v680, %v590
      %v683 = vmul.f32 %v680, %v595
      %v684 = vmul.f32 %v680, %v600
      %v685 = vmul.f32 %v680, %v605
      %v686 = vmul.f32 %v680, %v610
      %v687 = vmul.f32 %v680, %v615
      %v688 = vmul.f32 %v680, %v620
      %v689 = vmul.f32 %v680, %v625
      %v690 = vmul.f32 %v680, %v630
      %v691 = vmul.f32 %v680, %v635
      %v692 = vmul.f32 %v680, %v640
      %v693 = vmul.f32 %v680, %v645
      %v694 = vmul.f32 %v680, %v650
      %v695 = vmul.f32 %v680, %v655
      %v696 = vmul.f32 %v680, %v660
      %v697 = vsel %vm664, %v585, %v681
      %v698 = vsel %vm665, %v590, %v682
      %v699 = vsel %vm666, %v595, %v683
      %v700 = vsel %vm667, %v600, %v684
      %v701 = vsel %vm668, %v605, %v685
      %v702 = vsel %vm669, %v610, %v686
      %v703 = vsel %vm670, %v615, %v687
      %v704 = vsel %vm671, %v620, %v688
      %v705 = vsel %vm672, %v625, %v689
      %v706 = vsel %vm673, %v630, %v690
      %v707 = vsel %vm674, %v635, %v691
      %v708 = vsel %vm675, %v640, %v692
      %v709 = vsel %vm676, %v645, %v693
      %v710 = vsel %vm677, %v650, %v694
      %v711 = vsel %vm678, %v655, %v695
      %v712 = vsel %vm679, %v660, %v696
      %713 = vst [vmem:[%s9] sm:$0xff] %v697
      %714 = vst [vmem:[%s9 + $0x8] sm:$0xff] %v698
      %715 = vst [vmem:[%s9 + $0x10] sm:$0xff] %v699
      %716 = vst [vmem:[%s9 + $0x18] sm:$0xff] %v700
      %717 = vst [vmem:[%s9 + $0x20] sm:$0xff] %v701
      %718 = vst [vmem:[%s9 + $0x28] sm:$0xff] %v702
      %719 = vst [vmem:[%s9 + $0x30] sm:$0xff] %v703
      %720 = vst [vmem:[%s9 + $0x38] sm:$0xff] %v704
      %721 = vst [vmem:[%s9 + $0x40] sm:$0xff] %v705
      %722 = vst [vmem:[%s9 + $0x48] sm:$0xff] %v706
      %723 = vst [vmem:[%s9 + $0x50] sm:$0xff] %v707
      %724 = vst [vmem:[%s9 + $0x58] sm:$0xff] %v708
      %725 = vst [vmem:[%s9 + $0x60] sm:$0xff] %v709
      %726 = vst [vmem:[%s9 + $0x68] sm:$0xff] %v710
      %727 = vst [vmem:[%s9 + $0x70] sm:$0xff] %v711
      %728 = vst [vmem:[%s9 + $0x78] sm:$0xff] %v712
    $region49: #{run.3} parent=1 // pred_fallthru
      _
    // Predicated region
    $region50: #{run.3} parent=1 // pred_check
      _
    $region51: #{run.3} parent=1 // pred_check_branch
      %730 = sbr.rel (0) target = $region53
    $region52: #{run.3} parent=1 // pred_region
      _
    $region53: #{run.3} parent=1 // pred_fallthru
      _
    // Predicated region
    $region54: #{run.3} parent=1 // pred_check
      _
    $region55: #{run.3} parent=1 // pred_check_branch
      %732 = sbr.rel (0) target = $region57
    $region56: #{run.3} parent=1 // pred_region
      _
    $region57: #{run.3} parent=1 // pred_fallthru
      _
    %733 = vsyncpa [#allocation5], 1

// kernel: run.4
$region0: #{run.4}
  #allocation0 [shape = 'u32[]', space=smem, size = 0x4, offset = 0x4, fixed_abs, tag = 'smem constant byte address 0x4 - core index']
  #allocation1 [shape = 'u32[144,128]{1,0:T(1,128)}', space=vmem, size = 0x12000, scoped, tag = 'internal scratch']
  #allocation2 [shape = 'f32[128,128]{1,0:T(8,128)}', space=vmem, size = 0x10000, scoped, tag = 'scratch operand']
  #allocation3 [shape = 'f32[1]{0:T(128)S(6)}', space=smem, size = 0x200, scoped, tag = 'scoped memory for run.4']
  %s0 = inlined_call_operand.vmem [shape: f32[128,128], index: 0, kind: input, shape index: {}]
  %s1 = inlined_call_operand.vmem [shape: f32[128,128], index: 1, kind: input, shape index: {}]
  %s2 = inlined_call_operand.vmem [shape: f32[128,128], index: 2, kind: input, shape index: {}]
  %s3 = inlined_call_operand.vmem [shape: f32[1,128], index: 3, kind: input, shape index: {}]
  %s4 = inlined_call_operand.vmem [shape: f32[128,128], index: 4, kind: input, shape index: {}]
  %s5 = inlined_call_operand.vmem [shape: f32[1,128], index: 5, kind: input, shape index: {}]
  %s6 = inlined_call_operand.vmem [shape: f32[1,128], index: 6, kind: input, shape index: {}]
  %s7 = inlined_call_operand.vmem [shape: f32[1,128], index: 7, kind: input, shape index: {}]
  %s8 = inlined_call_operand.<no memory space> [shape: f32[1], index: 8, kind: input, shape index: {}]
  %s9 = inlined_call_operand.vmem [shape: f32[128,128], index: 9, kind: output, shape index: {}]
  %s10 = sld [smem:[#allocation0]]
  $region54: #{run.4} parent=0
    _
  %s12 = ssub.s32 1, %s10
  %s13 = scalar_select 0, %s12, %s10
  %14 = sst [smem:[#allocation3]] %s8
  // Predicated region
  $region2: #{run.4} parent=0 // pred_check
    _
  $region3: #{run.4} parent=0 // pred_check_branch
    %16 = sbr.rel (0) target = $region5
  $region4: #{run.4} parent=0 // pred_region
    _
  $region5: #{run.4} parent=0 // pred_fallthru
    _
  // Predicated region
  $region6: #{run.4} parent=0 // pred_check
    _
  $region7: #{run.4} parent=0 // pred_check_branch
    %18 = sbr.rel (0) target = $region9
  $region8: #{run.4} parent=0 // pred_region
    _
  $region9: #{run.4} parent=0 // pred_fallthru
    _
  // Predicated region
  $region10: #{run.4} parent=0 // pred_check
    _
  $region11: #{run.4} parent=0 // pred_check_branch
    %20 = sbr.rel (0) target = $region13
  $region12: #{run.4} parent=0 // pred_region
    _
  $region13: #{run.4} parent=0 // pred_fallthru
    _
  // Predicated region
  $region14: #{run.4} parent=0 // pred_check
    _
  $region15: #{run.4} parent=0 // pred_check_branch
    %22 = sbr.rel (0) target = $region17
  $region16: #{run.4} parent=0 // pred_region
    _
  $region17: #{run.4} parent=0 // pred_fallthru
    _
  // Predicated region
  $region18: #{run.4} parent=0 // pred_check
    _
  $region19: #{run.4} parent=0 // pred_check_branch
    %24 = sbr.rel (0) target = $region21
  $region20: #{run.4} parent=0 // pred_region
    _
  $region21: #{run.4} parent=0 // pred_fallthru
    _
  // Predicated region
  $region22: #{run.4} parent=0 // pred_check
    _
  $region23: #{run.4} parent=0 // pred_check_branch
    %26 = sbr.rel (0) target = $region25
  $region24: #{run.4} parent=0 // pred_region
    _
  $region25: #{run.4} parent=0 // pred_fallthru
    _
  // Predicated region
  $region26: #{run.4} parent=0 // pred_check
    _
  $region27: #{run.4} parent=0 // pred_check_branch
    %28 = sbr.rel (0) target = $region29
  $region28: #{run.4} parent=0 // pred_region
    _
  $region29: #{run.4} parent=0 // pred_fallthru
    _
  // Predicated region
  $region30: #{run.4} parent=0 // pred_check
    _
  $region31: #{run.4} parent=0 // pred_check_branch
    %30 = sbr.rel (0) target = $region33
  $region32: #{run.4} parent=0 // pred_region
    _
  $region33: #{run.4} parent=0 // pred_fallthru
    _
  // Predicated region
  $region34: #{run.4} parent=0 // pred_check
    _
  $region35: #{run.4} parent=0 // pred_check_branch
    %32 = sbr.rel (0) target = $region37
  $region36: #{run.4} parent=0 // pred_region
    _
  $region37: #{run.4} parent=0 // pred_fallthru
    _
  %p33 = scmp.eq.s32.totalorder 0, 0
  // Predicated region
  $region38: #{run.4} parent=0 // pred_check
    %p34 = pneg %p33
  $region39: #{run.4} parent=0 // pred_check_branch
    %36 = sbr.rel (%p34) target = $region41
  $region40: #{run.4} parent=0 // pred_region
    %37 = vst [vmem:[#allocation2] sm:$0xff] 0.0
    %38 = vst [vmem:[#allocation2 + $0x8] sm:$0xff] 0.0
    %39 = vst [vmem:[#allocation2 + $0x10] sm:$0xff] 0.0
    %40 = vst [vmem:[#allocation2 + $0x18] sm:$0xff] 0.0
    %41 = vst [vmem:[#allocation2 + $0x20] sm:$0xff] 0.0
    %42 = vst [vmem:[#allocation2 + $0x28] sm:$0xff] 0.0
    %43 = vst [vmem:[#allocation2 + $0x30] sm:$0xff] 0.0
    %44 = vst [vmem:[#allocation2 + $0x38] sm:$0xff] 0.0
    %45 = vst [vmem:[#allocation2 + $0x40] sm:$0xff] 0.0
    %46 = vst [vmem:[#allocation2 + $0x48] sm:$0xff] 0.0
    %47 = vst [vmem:[#allocation2 + $0x50] sm:$0xff] 0.0
    %48 = vst [vmem:[#allocation2 + $0x58] sm:$0xff] 0.0
    %49 = vst [vmem:[#allocation2 + $0x60] sm:$0xff] 0.0
    %50 = vst [vmem:[#allocation2 + $0x68] sm:$0xff] 0.0
    %51 = vst [vmem:[#allocation2 + $0x70] sm:$0xff] 0.0
    %52 = vst [vmem:[#allocation2 + $0x78] sm:$0xff] 0.0
  $region41: #{run.4} parent=0 // pred_fallthru
    _
  %v53 = vld [vmem:[#allocation2] sm:$0xff]
  %v54 = vld [vmem:[#allocation2 + $0x8] sm:$0xff]
  %v55 = vld [vmem:[#allocation2 + $0x10] sm:$0xff]
  %v56 = vld [vmem:[#allocation2 + $0x18] sm:$0xff]
  %v57 = vld [vmem:[#allocation2 + $0x20] sm:$0xff]
  %v58 = vld [vmem:[#allocation2 + $0x28] sm:$0xff]
  %v59 = vld [vmem:[#allocation2 + $0x30] sm:$0xff]
  %v60 = vld [vmem:[#allocation2 + $0x38] sm:$0xff]
  %v61 = vld [vmem:[#allocation2 + $0x40] sm:$0xff]
  %v62 = vld [vmem:[#allocation2 + $0x48] sm:$0xff]
  %v63 = vld [vmem:[#allocation2 + $0x50] sm:$0xff]
  %v64 = vld [vmem:[#allocation2 + $0x58] sm:$0xff]
  %v65 = vld [vmem:[#allocation2 + $0x60] sm:$0xff]
  %v66 = vld [vmem:[#allocation2 + $0x68] sm:$0xff]
  %v67 = vld [vmem:[#allocation2 + $0x70] sm:$0xff]
  %v68 = vld [vmem:[#allocation2 + $0x78] sm:$0xff]
  %v69 = vld [vmem:[%s0] sm:$0xff]
  %v70 = vld [vmem:[%s0 + $0x8] sm:$0xff]
  %v71 = vld [vmem:[%s0 + $0x10] sm:$0xff]
  %v72 = vld [vmem:[%s0 + $0x18] sm:$0xff]
  %v73 = vld [vmem:[%s0 + $0x20] sm:$0xff]
  %v74 = vld [vmem:[%s0 + $0x28] sm:$0xff]
  %v75 = vld [vmem:[%s0 + $0x30] sm:$0xff]
  %v76 = vld [vmem:[%s0 + $0x38] sm:$0xff]
  %v77 = vld [vmem:[%s0 + $0x40] sm:$0xff]
  %v78 = vld [vmem:[%s0 + $0x48] sm:$0xff]
  %v79 = vld [vmem:[%s0 + $0x50] sm:$0xff]
  %v80 = vld [vmem:[%s0 + $0x58] sm:$0xff]
  %v81 = vld [vmem:[%s0 + $0x60] sm:$0xff]
  %v82 = vld [vmem:[%s0 + $0x68] sm:$0xff]
  %v83 = vld [vmem:[%s0 + $0x70] sm:$0xff]
  %v84 = vld [vmem:[%s0 + $0x78] sm:$0xff]
  %v85 = vld [vmem:[%s1] sm:$0xff]
  %v86 = vld [vmem:[%s1 + $0x8] sm:$0xff]
  %v87 = vld [vmem:[%s1 + $0x10] sm:$0xff]
  %v88 = vld [vmem:[%s1 + $0x18] sm:$0xff]
  %v89 = vld [vmem:[%s1 + $0x20] sm:$0xff]
  %v90 = vld [vmem:[%s1 + $0x28] sm:$0xff]
  %v91 = vld [vmem:[%s1 + $0x30] sm:$0xff]
  %v92 = vld [vmem:[%s1 + $0x38] sm:$0xff]
  %v93 = vld [vmem:[%s1 + $0x40] sm:$0xff]
  %v94 = vld [vmem:[%s1 + $0x48] sm:$0xff]
  %v95 = vld [vmem:[%s1 + $0x50] sm:$0xff]
  %v96 = vld [vmem:[%s1 + $0x58] sm:$0xff]
  %v97 = vld [vmem:[%s1 + $0x60] sm:$0xff]
  %v98 = vld [vmem:[%s1 + $0x68] sm:$0xff]
  %v99 = vld [vmem:[%s1 + $0x70] sm:$0xff]
  %v100 = vld [vmem:[%s1 + $0x78] sm:$0xff]
  %101 = vmatprep.subr.mxu0 0.0
  %102 = vmatpush1.msra.mxu0 %v85
  %103 = vmatprep.subr.mxu0 0.0
  %104 = vmatpush1.msra.mxu0 %v86
  %105 = vmatprep.subr.mxu0 0.0
  %106 = vmatpush1.msra.mxu0 %v87
  %107 = vmatprep.subr.mxu0 0.0
  %108 = vmatpush1.msra.mxu0 %v88
  %109 = vmatprep.subr.mxu0 0.0
  %110 = vmatpush1.msra.mxu0 %v89
  %111 = vmatprep.subr.mxu0 0.0
  %112 = vmatpush1.msra.mxu0 %v90
  %113 = vmatprep.subr.mxu0 0.0
  %114 = vmatpush1.msra.mxu0 %v91
  %115 = vmatprep.subr.mxu0 0.0
  %116 = vmatpush1.msra.mxu0 %v92
  %117 = vmatprep.subr.mxu0 0.0
  %118 = vmatpush1.msra.mxu0 %v93
  %119 = vmatprep.subr.mxu0 0.0
  %120 = vmatpush1.msra.mxu0 %v94
  %121 = vmatprep.subr.mxu0 0.0
  %122 = vmatpush1.msra.mxu0 %v95
  %123 = vmatprep.subr.mxu0 0.0
  %124 = vmatpush1.msra.mxu0 %v96
  %125 = vmatprep.subr.mxu0 0.0
  %126 = vmatpush1.msra.mxu0 %v97
  %127 = vmatprep.subr.mxu0 0.0
  %128 = vmatpush1.msra.mxu0 %v98
  %129 = vmatprep.subr.mxu0 0.0
  %130 = vmatpush1.msra.mxu0 %v99
  %131 = vmatprep.subr.mxu0 0.0
  %132 = vmatpush1.msra.mxu0 %v100
  %133 = vmatprep.subr.mxu0 0.0
  %134 = vmatpush1.msra.mxu0 0.0
  %135 = vmatprep.subr.mxu0 0.0
  %136 = vmatpush1.msra.mxu0 0.0
  %137 = vmatprep.subr.mxu0 0.0
  %138 = vmatpush1.msra.mxu0 0.0
  %139 = vmatprep.subr.mxu0 0.0
  %140 = vmatpush1.msra.mxu0 0.0
  %141 = vmatprep.subr.mxu0 0.0
  %142 = vmatpush1.msra.mxu0 0.0
  %143 = vmatprep.subr.mxu0 0.0
  %144 = vmatpush1.msra.mxu0 0.0
  %145 = vmatprep.subr.mxu0 0.0
  %146 = vmatpush1.msra.mxu0 0.0
  %147 = vmatprep.subr.mxu0 0.0
  %148 = vmatpush1.msra.mxu0 0.0
  %149 = vmatprep.subr.mxu0 0.0
  %150 = vmatpush1.msra.mxu0 0.0
  %151 = vmatprep.subr.mxu0 0.0
  %152 = vmatpush1.msra.mxu0 0.0
  %153 = vmatprep.subr.mxu0 0.0
  %154 = vmatpush1.msra.mxu0 0.0
  %155 = vmatprep.subr.mxu0 0.0
  %156 = vmatpush1.msra.mxu0 0.0
  %157 = vmatprep.subr.mxu0 0.0
  %158 = vmatpush1.msra.mxu0 0.0
  %159 = vmatprep.subr.mxu0 0.0
  %160 = vmatpush1.msra.mxu0 0.0
  %161 = vmatprep.subr.mxu0 0.0
  %162 = vmatpush1.msra.mxu0 0.0
  %163 = vmatprep.subr.mxu0 0.0
  %164 = vmatpush1.msra.mxu0 0.0
  %165 = vmatprep.mubr.f32.mxu0 0.0
  %166 = vmatmul.mubr.f32.gmra.mrb[0].mxu0 %v69
  %v167 = vpop.f32.mrb[0].mxu0
  %v168 = vadd.f32 0.0, %v167
  %v169 = vpop.f32.mrb[0].mxu0
  %170 = vmatprep.mubr.f32.mxu0 0.0
  %171 = vmatmul.mubr.f32.gmra.mrb[0].mxu0 %v70
  %v172 = vpop.f32.mrb[0].mxu0
  %v173 = vadd.f32 0.0, %v172
  %v174 = vpop.f32.mrb[0].mxu0
  %175 = vmatprep.mubr.f32.mxu0 0.0
  %176 = vmatmul.mubr.f32.gmra.mrb[0].mxu0 %v71
  %v177 = vpop.f32.mrb[0].mxu0
  %v178 = vadd.f32 0.0, %v177
  %v179 = vpop.f32.mrb[0].mxu0
  %180 = vmatprep.mubr.f32.mxu0 0.0
  %181 = vmatmul.mubr.f32.gmra.mrb[0].mxu0 %v72
  %v182 = vpop.f32.mrb[0].mxu0
  %v183 = vadd.f32 0.0, %v182
  %v184 = vpop.f32.mrb[0].mxu0
  %185 = vmatprep.mubr.f32.mxu0 0.0
  %186 = vmatmul.mubr.f32.gmra.mrb[0].mxu0 %v73
  %v187 = vpop.f32.mrb[0].mxu0
  %v188 = vadd.f32 0.0, %v187
  %v189 = vpop.f32.mrb[0].mxu0
  %190 = vmatprep.mubr.f32.mxu0 0.0
  %191 = vmatmul.mubr.f32.gmra.mrb[0].mxu0 %v74
  %v192 = vpop.f32.mrb[0].mxu0
  %v193 = vadd.f32 0.0, %v192
  %v194 = vpop.f32.mrb[0].mxu0
  %195 = vmatprep.mubr.f32.mxu0 0.0
  %196 = vmatmul.mubr.f32.gmra.mrb[0].mxu0 %v75
  %v197 = vpop.f32.mrb[0].mxu0
  %v198 = vadd.f32 0.0, %v197
  %v199 = vpop.f32.mrb[0].mxu0
  %200 = vmatprep.mubr.f32.mxu0 0.0
  %201 = vmatmul.mubr.f32.gmra.mrb[0].mxu0 %v76
  %v202 = vpop.f32.mrb[0].mxu0
  %v203 = vadd.f32 0.0, %v202
  %v204 = vpop.f32.mrb[0].mxu0
  %205 = vmatprep.mubr.f32.mxu0 0.0
  %206 = vmatmul.mubr.f32.gmra.mrb[0].mxu0 %v77
  %v207 = vpop.f32.mrb[0].mxu0
  %v208 = vadd.f32 0.0, %v207
  %v209 = vpop.f32.mrb[0].mxu0
  %210 = vmatprep.mubr.f32.mxu0 0.0
  %211 = vmatmul.mubr.f32.gmra.mrb[0].mxu0 %v78
  %v212 = vpop.f32.mrb[0].mxu0
  %v213 = vadd.f32 0.0, %v212
  %v214 = vpop.f32.mrb[0].mxu0
  %215 = vmatprep.mubr.f32.mxu0 0.0
  %216 = vmatmul.mubr.f32.gmra.mrb[0].mxu0 %v79
  %v217 = vpop.f32.mrb[0].mxu0
  %v218 = vadd.f32 0.0, %v217
  %v219 = vpop.f32.mrb[0].mxu0
  %220 = vmatprep.mubr.f32.mxu0 0.0
  %221 = vmatmul.mubr.f32.gmra.mrb[0].mxu0 %v80
  %v222 = vpop.f32.mrb[0].mxu0
  %v223 = vadd.f32 0.0, %v222
  %v224 = vpop.f32.mrb[0].mxu0
  %225 = vmatprep.mubr.f32.mxu0 0.0
  %226 = vmatmul.mubr.f32.gmra.mrb[0].mxu0 %v81
  %v227 = vpop.f32.mrb[0].mxu0
  %v228 = vadd.f32 0.0, %v227
  %v229 = vpop.f32.mrb[0].mxu0
  %230 = vmatprep.mubr.f32.mxu0 0.0
  %231 = vmatmul.mubr.f32.gmra.mrb[0].mxu0 %v82
  %v232 = vpop.f32.mrb[0].mxu0
  %v233 = vadd.f32 0.0, %v232
  %v234 = vpop.f32.mrb[0].mxu0
  %235 = vmatprep.mubr.f32.mxu0 0.0
  %236 = vmatmul.mubr.f32.gmra.mrb[0].mxu0 %v83
  %v237 = vpop.f32.mrb[0].mxu0
  %v238 = vadd.f32 0.0, %v237
  %v239 = vpop.f32.mrb[0].mxu0
  %240 = vmatprep.mubr.f32.mxu0 0.0
  %241 = vmatmul.mubr.f32.gmra.mrb[0].mxu0 %v84
  %v242 = vpop.f32.mrb[0].mxu0
  %v243 = vadd.f32 0.0, %v242
  %v244 = vpop.f32.mrb[0].mxu0
  %245 = vdwg.mxu0
  %v246 = vadd.f32 %v53, %v168
  %v247 = vadd.f32 %v54, %v173
  %v248 = vadd.f32 %v55, %v178
  %v249 = vadd.f32 %v56, %v183
  %v250 = vadd.f32 %v57, %v188
  %v251 = vadd.f32 %v58, %v193
  %v252 = vadd.f32 %v59, %v198
  %v253 = vadd.f32 %v60, %v203
  %v254 = vadd.f32 %v61, %v208
  %v255 = vadd.f32 %v62, %v213
  %v256 = vadd.f32 %v63, %v218
  %v257 = vadd.f32 %v64, %v223
  %v258 = vadd.f32 %v65, %v228
  %v259 = vadd.f32 %v66, %v233
  %v260 = vadd.f32 %v67, %v238
  %v261 = vadd.f32 %v68, %v243
  %262 = vst [vmem:[#allocation2] sm:$0xff] %v246
  %263 = vst [vmem:[#allocation2 + $0x8] sm:$0xff] %v247
  %264 = vst [vmem:[#allocation2 + $0x10] sm:$0xff] %v248
  %265 = vst [vmem:[#allocation2 + $0x18] sm:$0xff] %v249
  %266 = vst [vmem:[#allocation2 + $0x20] sm:$0xff] %v250
  %267 = vst [vmem:[#allocation2 + $0x28] sm:$0xff] %v251
  %268 = vst [vmem:[#allocation2 + $0x30] sm:$0xff] %v252
  %269 = vst [vmem:[#allocation2 + $0x38] sm:$0xff] %v253
  %270 = vst [vmem:[#allocation2 + $0x40] sm:$0xff] %v254
  %271 = vst [vmem:[#allocation2 + $0x48] sm:$0xff] %v255
  %272 = vst [vmem:[#allocation2 + $0x50] sm:$0xff] %v256
  %273 = vst [vmem:[#allocation2 + $0x58] sm:$0xff] %v257
  %274 = vst [vmem:[#allocation2 + $0x60] sm:$0xff] %v258
  %275 = vst [vmem:[#allocation2 + $0x68] sm:$0xff] %v259
  %276 = vst [vmem:[#allocation2 + $0x70] sm:$0xff] %v260
  %277 = vst [vmem:[#allocation2 + $0x78] sm:$0xff] %v261
  // Predicated region
  $region42: #{run.4} parent=0 // pred_check
    %p278 = pneg %p33
  $region43: #{run.4} parent=0 // pred_check_branch
    %280 = sbr.rel (%p278) target = $region45
  $region44: #{run.4} parent=0 // pred_region
    %v281 = vld [vmem:[#allocation2] sm:$0xff]
    %v282 = vld [vmem:[#allocation2 + $0x8] sm:$0xff]
    %v283 = vld [vmem:[#allocation2 + $0x10] sm:$0xff]
    %v284 = vld [vmem:[#allocation2 + $0x18] sm:$0xff]
    %v285 = vld [vmem:[#allocation2 + $0x20] sm:$0xff]
    %v286 = vld [vmem:[#allocation2 + $0x28] sm:$0xff]
    %v287 = vld [vmem:[#allocation2 + $0x30] sm:$0xff]
    %v288 = vld [vmem:[#allocation2 + $0x38] sm:$0xff]
    %v289 = vld [vmem:[#allocation2 + $0x40] sm:$0xff]
    %v290 = vld [vmem:[#allocation2 + $0x48] sm:$0xff]
    %v291 = vld [vmem:[#allocation2 + $0x50] sm:$0xff]
    %v292 = vld [vmem:[#allocation2 + $0x58] sm:$0xff]
    %v293 = vld [vmem:[#allocation2 + $0x60] sm:$0xff]
    %v294 = vld [vmem:[#allocation2 + $0x68] sm:$0xff]
    %v295 = vld [vmem:[#allocation2 + $0x70] sm:$0xff]
    %v296 = vld [vmem:[#allocation2 + $0x78] sm:$0xff]
    %v297 = vld [vmem:[%s2] sm:$0xff]
    %v298 = vld [vmem:[%s2 + $0x8] sm:$0xff]
    %v299 = vld [vmem:[%s2 + $0x10] sm:$0xff]
    %v300 = vld [vmem:[%s2 + $0x18] sm:$0xff]
    %v301 = vld [vmem:[%s2 + $0x20] sm:$0xff]
    %v302 = vld [vmem:[%s2 + $0x28] sm:$0xff]
    %v303 = vld [vmem:[%s2 + $0x30] sm:$0xff]
    %v304 = vld [vmem:[%s2 + $0x38] sm:$0xff]
    %v305 = vld [vmem:[%s2 + $0x40] sm:$0xff]
    %v306 = vld [vmem:[%s2 + $0x48] sm:$0xff]
    %v307 = vld [vmem:[%s2 + $0x50] sm:$0xff]
    %v308 = vld [vmem:[%s2 + $0x58] sm:$0xff]
    %v309 = vld [vmem:[%s2 + $0x60] sm:$0xff]
    %v310 = vld [vmem:[%s2 + $0x68] sm:$0xff]
    %v311 = vld [vmem:[%s2 + $0x70] sm:$0xff]
    %v312 = vld [vmem:[%s2 + $0x78] sm:$0xff]
    %v313 = vld [vmem:[%s3] sm:$0x1]
    %v315 = vlaneseq
    %v316 = vshrl.u32 %v315, 7
    %v317 = vsub.s32 0, %v316
    %v318 = vrot.slane %v313, %v317
    %320 = vmatprep.subr.mxu0 0.0
    %321 = vmatpush1.msra.mxu0 %v297
    %322 = vmatprep.subr.mxu0 0.0
    %323 = vmatpush1.msra.mxu0 %v298
    %324 = vmatprep.subr.mxu0 0.0
    %325 = vmatpush1.msra.mxu0 %v299
    %326 = vmatprep.subr.mxu0 0.0
    %327 = vmatpush1.msra.mxu0 %v300
    %328 = vmatprep.subr.mxu0 0.0
    %329 = vmatpush1.msra.mxu0 %v301
    %330 = vmatprep.subr.mxu0 0.0
    %331 = vmatpush1.msra.mxu0 %v302
    %332 = vmatprep.subr.mxu0 0.0
    %333 = vmatpush1.msra.mxu0 %v303
    %334 = vmatprep.subr.mxu0 0.0
    %335 = vmatpush1.msra.mxu0 %v304
    %336 = vmatprep.subr.mxu0 0.0
    %337 = vmatpush1.msra.mxu0 %v305
    %338 = vmatprep.subr.mxu0 0.0
    %339 = vmatpush1.msra.mxu0 %v306
    %340 = vmatprep.subr.mxu0 0.0
    %341 = vmatpush1.msra.mxu0 %v307
    %342 = vmatprep.subr.mxu0 0.0
    %343 = vmatpush1.msra.mxu0 %v308
    %344 = vmatprep.subr.mxu0 0.0
    %345 = vmatpush1.msra.mxu0 %v309
    %346 = vmatprep.subr.mxu0 0.0
    %347 = vmatpush1.msra.mxu0 %v310
    %348 = vmatprep.subr.mxu0 0.0
    %349 = vmatpush1.msra.mxu0 %v311
    %350 = vmatprep.subr.mxu0 0.0
    %351 = vmatpush1.msra.mxu0 %v312
    %352 = vmatprep.subr.mxu0 0.0
    %353 = vmatpush1.msra.mxu0 0.0
    %354 = vmatprep.subr.mxu0 0.0
    %355 = vmatpush1.msra.mxu0 0.0
    %356 = vmatprep.subr.mxu0 0.0
    %357 = vmatpush1.msra.mxu0 0.0
    %358 = vmatprep.subr.mxu0 0.0
    %359 = vmatpush1.msra.mxu0 0.0
    %360 = vmatprep.subr.mxu0 0.0
    %361 = vmatpush1.msra.mxu0 0.0
    %362 = vmatprep.subr.mxu0 0.0
    %363 = vmatpush1.msra.mxu0 0.0
    %364 = vmatprep.subr.mxu0 0.0
    %365 = vmatpush1.msra.mxu0 0.0
    %366 = vmatprep.subr.mxu0 0.0
    %367 = vmatpush1.msra.mxu0 0.0
    %368 = vmatprep.subr.mxu0 0.0
    %369 = vmatpush1.msra.mxu0 0.0
    %370 = vmatprep.subr.mxu0 0.0
    %371 = vmatpush1.msra.mxu0 0.0
    %372 = vmatprep.subr.mxu0 0.0
    %373 = vmatpush1.msra.mxu0 0.0
    %374 = vmatprep.subr.mxu0 0.0
    %375 = vmatpush1.msra.mxu0 0.0
    %376 = vmatprep.subr.mxu0 0.0
    %377 = vmatpush1.msra.mxu0 0.0
    %378 = vmatprep.subr.mxu0 0.0
    %379 = vmatpush1.msra.mxu0 0.0
    %380 = vmatprep.subr.mxu0 0.0
    %381 = vmatpush1.msra.mxu0 0.0
    %382 = vmatprep.subr.mxu0 0.0
    %383 = vmatpush1.msra.mxu0 0.0
    %384 = vmatprep.mubr.f32.mxu0 0.0
    %385 = vmatmul.mubr.f32.gmra.mrb[0].mxu0 %v281
    %v386 = vpop.f32.mrb[0].mxu0
    %v387 = vadd.f32 %v318, %v386
    %v388 = vpop.f32.mrb[0].mxu0
    %389 = vmatprep.mubr.f32.mxu0 0.0
    %390 = vmatmul.mubr.f32.gmra.mrb[0].mxu0 %v282
    %v391 = vpop.f32.mrb[0].mxu0
    %v392 = vadd.f32 %v318, %v391
    %v393 = vpop.f32.mrb[0].mxu0
    %394 = vmatprep.mubr.f32.mxu0 0.0
    %395 = vmatmul.mubr.f32.gmra.mrb[0].mxu0 %v283
    %v396 = vpop.f32.mrb[0].mxu0
    %v397 = vadd.f32 %v318, %v396
    %v398 = vpop.f32.mrb[0].mxu0
    %399 = vmatprep.mubr.f32.mxu0 0.0
    %400 = vmatmul.mubr.f32.gmra.mrb[0].mxu0 %v284
    %v401 = vpop.f32.mrb[0].mxu0
    %v402 = vadd.f32 %v318, %v401
    %v403 = vpop.f32.mrb[0].mxu0
    %404 = vmatprep.mubr.f32.mxu0 0.0
    %405 = vmatmul.mubr.f32.gmra.mrb[0].mxu0 %v285
    %v406 = vpop.f32.mrb[0].mxu0
    %v407 = vadd.f32 %v318, %v406
    %v408 = vpop.f32.mrb[0].mxu0
    %409 = vmatprep.mubr.f32.mxu0 0.0
    %410 = vmatmul.mubr.f32.gmra.mrb[0].mxu0 %v286
    %v411 = vpop.f32.mrb[0].mxu0
    %v412 = vadd.f32 %v318, %v411
    %v413 = vpop.f32.mrb[0].mxu0
    %414 = vmatprep.mubr.f32.mxu0 0.0
    %415 = vmatmul.mubr.f32.gmra.mrb[0].mxu0 %v287
    %v416 = vpop.f32.mrb[0].mxu0
    %v417 = vadd.f32 %v318, %v416
    %v418 = vpop.f32.mrb[0].mxu0
    %419 = vmatprep.mubr.f32.mxu0 0.0
    %420 = vmatmul.mubr.f32.gmra.mrb[0].mxu0 %v288
    %v421 = vpop.f32.mrb[0].mxu0
    %v422 = vadd.f32 %v318, %v421
    %v423 = vpop.f32.mrb[0].mxu0
    %424 = vmatprep.mubr.f32.mxu0 0.0
    %425 = vmatmul.mubr.f32.gmra.mrb[0].mxu0 %v289
    %v426 = vpop.f32.mrb[0].mxu0
    %v427 = vadd.f32 %v318, %v426
    %v428 = vpop.f32.mrb[0].mxu0
    %429 = vmatprep.mubr.f32.mxu0 0.0
    %430 = vmatmul.mubr.f32.gmra.mrb[0].mxu0 %v290
    %v431 = vpop.f32.mrb[0].mxu0
    %v432 = vadd.f32 %v318, %v431
    %v433 = vpop.f32.mrb[0].mxu0
    %434 = vmatprep.mubr.f32.mxu0 0.0
    %435 = vmatmul.mubr.f32.gmra.mrb[0].mxu0 %v291
    %v436 = vpop.f32.mrb[0].mxu0
    %v437 = vadd.f32 %v318, %v436
    %v438 = vpop.f32.mrb[0].mxu0
    %439 = vmatprep.mubr.f32.mxu0 0.0
    %440 = vmatmul.mubr.f32.gmra.mrb[0].mxu0 %v292
    %v441 = vpop.f32.mrb[0].mxu0
    %v442 = vadd.f32 %v318, %v441
    %v443 = vpop.f32.mrb[0].mxu0
    %444 = vmatprep.mubr.f32.mxu0 0.0
    %445 = vmatmul.mubr.f32.gmra.mrb[0].mxu0 %v293
    %v446 = vpop.f32.mrb[0].mxu0
    %v447 = vadd.f32 %v318, %v446
    %v448 = vpop.f32.mrb[0].mxu0
    %449 = vmatprep.mubr.f32.mxu0 0.0
    %450 = vmatmul.mubr.f32.gmra.mrb[0].mxu0 %v294
    %v451 = vpop.f32.mrb[0].mxu0
    %v452 = vadd.f32 %v318, %v451
    %v453 = vpop.f32.mrb[0].mxu0
    %454 = vmatprep.mubr.f32.mxu0 0.0
    %455 = vmatmul.mubr.f32.gmra.mrb[0].mxu0 %v295
    %v456 = vpop.f32.mrb[0].mxu0
    %v457 = vadd.f32 %v318, %v456
    %v458 = vpop.f32.mrb[0].mxu0
    %459 = vmatprep.mubr.f32.mxu0 0.0
    %460 = vmatmul.mubr.f32.gmra.mrb[0].mxu0 %v296
    %v461 = vpop.f32.mrb[0].mxu0
    %v462 = vadd.f32 %v318, %v461
    %v463 = vpop.f32.mrb[0].mxu0
    %464 = vdwg.mxu0
    %v465 = vmax.f32 %v387, 0.0
    %v466 = vmax.f32 %v392, 0.0
    %v467 = vmax.f32 %v397, 0.0
    %v468 = vmax.f32 %v402, 0.0
    %v469 = vmax.f32 %v407, 0.0
    %v470 = vmax.f32 %v412, 0.0
    %v471 = vmax.f32 %v417, 0.0
    %v472 = vmax.f32 %v422, 0.0
    %v473 = vmax.f32 %v427, 0.0
    %v474 = vmax.f32 %v432, 0.0
    %v475 = vmax.f32 %v437, 0.0
    %v476 = vmax.f32 %v442, 0.0
    %v477 = vmax.f32 %v447, 0.0
    %v478 = vmax.f32 %v452, 0.0
    %v479 = vmax.f32 %v457, 0.0
    %v480 = vmax.f32 %v462, 0.0
    %v481 = vld [vmem:[%s4] sm:$0xff]
    %v482 = vld [vmem:[%s4 + $0x8] sm:$0xff]
    %v483 = vld [vmem:[%s4 + $0x10] sm:$0xff]
    %v484 = vld [vmem:[%s4 + $0x18] sm:$0xff]
    %v485 = vld [vmem:[%s4 + $0x20] sm:$0xff]
    %v486 = vld [vmem:[%s4 + $0x28] sm:$0xff]
    %v487 = vld [vmem:[%s4 + $0x30] sm:$0xff]
    %v488 = vld [vmem:[%s4 + $0x38] sm:$0xff]
    %v489 = vld [vmem:[%s4 + $0x40] sm:$0xff]
    %v490 = vld [vmem:[%s4 + $0x48] sm:$0xff]
    %v491 = vld [vmem:[%s4 + $0x50] sm:$0xff]
    %v492 = vld [vmem:[%s4 + $0x58] sm:$0xff]
    %v493 = vld [vmem:[%s4 + $0x60] sm:$0xff]
    %v494 = vld [vmem:[%s4 + $0x68] sm:$0xff]
    %v495 = vld [vmem:[%s4 + $0x70] sm:$0xff]
    %v496 = vld [vmem:[%s4 + $0x78] sm:$0xff]
    %v497 = vld [vmem:[%s5] sm:$0x1]
    %v499 = vlaneseq
    %v500 = vshrl.u32 %v499, 7
    %v501 = vsub.s32 0, %v500
    %v502 = vrot.slane %v497, %v501
    %504 = vmatprep.subr.mxu0 0.0
    %505 = vmatpush1.msra.mxu0 %v481
    %506 = vmatprep.subr.mxu0 0.0
    %507 = vmatpush1.msra.mxu0 %v482
    %508 = vmatprep.subr.mxu0 0.0
    %509 = vmatpush1.msra.mxu0 %v483
    %510 = vmatprep.subr.mxu0 0.0
    %511 = vmatpush1.msra.mxu0 %v484
    %512 = vmatprep.subr.mxu0 0.0
    %513 = vmatpush1.msra.mxu0 %v485
    %514 = vmatprep.subr.mxu0 0.0
    %515 = vmatpush1.msra.mxu0 %v486
    %516 = vmatprep.subr.mxu0 0.0
    %517 = vmatpush1.msra.mxu0 %v487
    %518 = vmatprep.subr.mxu0 0.0
    %519 = vmatpush1.msra.mxu0 %v488
    %520 = vmatprep.subr.mxu0 0.0
    %521 = vmatpush1.msra.mxu0 %v489
    %522 = vmatprep.subr.mxu0 0.0
    %523 = vmatpush1.msra.mxu0 %v490
    %524 = vmatprep.subr.mxu0 0.0
    %525 = vmatpush1.msra.mxu0 %v491
    %526 = vmatprep.subr.mxu0 0.0
    %527 = vmatpush1.msra.mxu0 %v492
    %528 = vmatprep.subr.mxu0 0.0
    %529 = vmatpush1.msra.mxu0 %v493
    %530 = vmatprep.subr.mxu0 0.0
    %531 = vmatpush1.msra.mxu0 %v494
    %532 = vmatprep.subr.mxu0 0.0
    %533 = vmatpush1.msra.mxu0 %v495
    %534 = vmatprep.subr.mxu0 0.0
    %535 = vmatpush1.msra.mxu0 %v496
    %536 = vmatprep.subr.mxu0 0.0
    %537 = vmatpush1.msra.mxu0 0.0
    %538 = vmatprep.subr.mxu0 0.0
    %539 = vmatpush1.msra.mxu0 0.0
    %540 = vmatprep.subr.mxu0 0.0
    %541 = vmatpush1.msra.mxu0 0.0
    %542 = vmatprep.subr.mxu0 0.0
    %543 = vmatpush1.msra.mxu0 0.0
    %544 = vmatprep.subr.mxu0 0.0
    %545 = vmatpush1.msra.mxu0 0.0
    %546 = vmatprep.subr.mxu0 0.0
    %547 = vmatpush1.msra.mxu0 0.0
    %548 = vmatprep.subr.mxu0 0.0
    %549 = vmatpush1.msra.mxu0 0.0
    %550 = vmatprep.subr.mxu0 0.0
    %551 = vmatpush1.msra.mxu0 0.0
    %552 = vmatprep.subr.mxu0 0.0
    %553 = vmatpush1.msra.mxu0 0.0
    %554 = vmatprep.subr.mxu0 0.0
    %555 = vmatpush1.msra.mxu0 0.0
    %556 = vmatprep.subr.mxu0 0.0
    %557 = vmatpush1.msra.mxu0 0.0
    %558 = vmatprep.subr.mxu0 0.0
    %559 = vmatpush1.msra.mxu0 0.0
    %560 = vmatprep.subr.mxu0 0.0
    %561 = vmatpush1.msra.mxu0 0.0
    %562 = vmatprep.subr.mxu0 0.0
    %563 = vmatpush1.msra.mxu0 0.0
    %564 = vmatprep.subr.mxu0 0.0
    %565 = vmatpush1.msra.mxu0 0.0
    %566 = vmatprep.subr.mxu0 0.0
    %567 = vmatpush1.msra.mxu0 0.0
    %568 = vmatprep.mubr.f32.mxu0 0.0
    %569 = vmatmul.mubr.f32.gmra.mrb[0].mxu0 %v465
    %v570 = vpop.f32.mrb[0].mxu0
    %v571 = vadd.f32 %v502, %v570
    %v572 = vpop.f32.mrb[0].mxu0
    %573 = vmatprep.mubr.f32.mxu0 0.0
    %574 = vmatmul.mubr.f32.gmra.mrb[0].mxu0 %v466
    %v575 = vpop.f32.mrb[0].mxu0
    %v576 = vadd.f32 %v502, %v575
    %v577 = vpop.f32.mrb[0].mxu0
    %578 = vmatprep.mubr.f32.mxu0 0.0
    %579 = vmatmul.mubr.f32.gmra.mrb[0].mxu0 %v467
    %v580 = vpop.f32.mrb[0].mxu0
    %v581 = vadd.f32 %v502, %v580
    %v582 = vpop.f32.mrb[0].mxu0
    %583 = vmatprep.mubr.f32.mxu0 0.0
    %584 = vmatmul.mubr.f32.gmra.mrb[0].mxu0 %v468
    %v585 = vpop.f32.mrb[0].mxu0
    %v586 = vadd.f32 %v502, %v585
    %v587 = vpop.f32.mrb[0].mxu0
    %588 = vmatprep.mubr.f32.mxu0 0.0
    %589 = vmatmul.mubr.f32.gmra.mrb[0].mxu0 %v469
    %v590 = vpop.f32.mrb[0].mxu0
    %v591 = vadd.f32 %v502, %v590
    %v592 = vpop.f32.mrb[0].mxu0
    %593 = vmatprep.mubr.f32.mxu0 0.0
    %594 = vmatmul.mubr.f32.gmra.mrb[0].mxu0 %v470
    %v595 = vpop.f32.mrb[0].mxu0
    %v596 = vadd.f32 %v502, %v595
    %v597 = vpop.f32.mrb[0].mxu0
    %598 = vmatprep.mubr.f32.mxu0 0.0
    %599 = vmatmul.mubr.f32.gmra.mrb[0].mxu0 %v471
    %v600 = vpop.f32.mrb[0].mxu0
    %v601 = vadd.f32 %v502, %v600
    %v602 = vpop.f32.mrb[0].mxu0
    %603 = vmatprep.mubr.f32.mxu0 0.0
    %604 = vmatmul.mubr.f32.gmra.mrb[0].mxu0 %v472
    %v605 = vpop.f32.mrb[0].mxu0
    %v606 = vadd.f32 %v502, %v605
    %v607 = vpop.f32.mrb[0].mxu0
    %608 = vmatprep.mubr.f32.mxu0 0.0
    %609 = vmatmul.mubr.f32.gmra.mrb[0].mxu0 %v473
    %v610 = vpop.f32.mrb[0].mxu0
    %v611 = vadd.f32 %v502, %v610
    %v612 = vpop.f32.mrb[0].mxu0
    %613 = vmatprep.mubr.f32.mxu0 0.0
    %614 = vmatmul.mubr.f32.gmra.mrb[0].mxu0 %v474
    %v615 = vpop.f32.mrb[0].mxu0
    %v616 = vadd.f32 %v502, %v615
    %v617 = vpop.f32.mrb[0].mxu0
    %618 = vmatprep.mubr.f32.mxu0 0.0
    %619 = vmatmul.mubr.f32.gmra.mrb[0].mxu0 %v475
    %v620 = vpop.f32.mrb[0].mxu0
    %v621 = vadd.f32 %v502, %v620
    %v622 = vpop.f32.mrb[0].mxu0
    %623 = vmatprep.mubr.f32.mxu0 0.0
    %624 = vmatmul.mubr.f32.gmra.mrb[0].mxu0 %v476
    %v625 = vpop.f32.mrb[0].mxu0
    %v626 = vadd.f32 %v502, %v625
    %v627 = vpop.f32.mrb[0].mxu0
    %628 = vmatprep.mubr.f32.mxu0 0.0
    %629 = vmatmul.mubr.f32.gmra.mrb[0].mxu0 %v477
    %v630 = vpop.f32.mrb[0].mxu0
    %v631 = vadd.f32 %v502, %v630
    %v632 = vpop.f32.mrb[0].mxu0
    %633 = vmatprep.mubr.f32.mxu0 0.0
    %634 = vmatmul.mubr.f32.gmra.mrb[0].mxu0 %v478
    %v635 = vpop.f32.mrb[0].mxu0
    %v636 = vadd.f32 %v502, %v635
    %v637 = vpop.f32.mrb[0].mxu0
    %638 = vmatprep.mubr.f32.mxu0 0.0
    %639 = vmatmul.mubr.f32.gmra.mrb[0].mxu0 %v479
    %v640 = vpop.f32.mrb[0].mxu0
    %v641 = vadd.f32 %v502, %v640
    %v642 = vpop.f32.mrb[0].mxu0
    %643 = vmatprep.mubr.f32.mxu0 0.0
    %644 = vmatmul.mubr.f32.gmra.mrb[0].mxu0 %v480
    %v645 = vpop.f32.mrb[0].mxu0
    %v646 = vadd.f32 %v502, %v645
    %v647 = vpop.f32.mrb[0].mxu0
    %648 = vdwg.mxu0
    %s649 = sld [smem:[#allocation3]]
    %vm650 = vcmp.ge.f32.partialorder %v571, 0.0
    %vm651 = vcmp.ge.f32.partialorder %v576, 0.0
    %vm652 = vcmp.ge.f32.partialorder %v581, 0.0
    %vm653 = vcmp.ge.f32.partialorder %v586, 0.0
    %vm654 = vcmp.ge.f32.partialorder %v591, 0.0
    %vm655 = vcmp.ge.f32.partialorder %v596, 0.0
    %vm656 = vcmp.ge.f32.partialorder %v601, 0.0
    %vm657 = vcmp.ge.f32.partialorder %v606, 0.0
    %vm658 = vcmp.ge.f32.partialorder %v611, 0.0
    %vm659 = vcmp.ge.f32.partialorder %v616, 0.0
    %vm660 = vcmp.ge.f32.partialorder %v621, 0.0
    %vm661 = vcmp.ge.f32.partialorder %v626, 0.0
    %vm662 = vcmp.ge.f32.partialorder %v631, 0.0
    %vm663 = vcmp.ge.f32.partialorder %v636, 0.0
    %vm664 = vcmp.ge.f32.partialorder %v641, 0.0
    %vm665 = vcmp.ge.f32.partialorder %v646, 0.0
    %v666 = vstv %s649
    %v667 = vmul.f32 %v666, %v571
    %v668 = vmul.f32 %v666, %v576
    %v669 = vmul.f32 %v666, %v581
    %v670 = vmul.f32 %v666, %v586
    %v671 = vmul.f32 %v666, %v591
    %v672 = vmul.f32 %v666, %v596
    %v673 = vmul.f32 %v666, %v601
    %v674 = vmul.f32 %v666, %v606
    %v675 = vmul.f32 %v666, %v611
    %v676 = vmul.f32 %v666, %v616
    %v677 = vmul.f32 %v666, %v621
    %v678 = vmul.f32 %v666, %v626
    %v679 = vmul.f32 %v666, %v631
    %v680 = vmul.f32 %v666, %v636
    %v681 = vmul.f32 %v666, %v641
    %v682 = vmul.f32 %v666, %v646
    %v683 = vsel %vm650, %v571, %v667
    %v684 = vsel %vm651, %v576, %v668
    %v685 = vsel %vm652, %v581, %v669
    %v686 = vsel %vm653, %v586, %v670
    %v687 = vsel %vm654, %v591, %v671
    %v688 = vsel %vm655, %v596, %v672
    %v689 = vsel %vm656, %v601, %v673
    %v690 = vsel %vm657, %v606, %v674
    %v691 = vsel %vm658, %v611, %v675
    %v692 = vsel %vm659, %v616, %v676
    %v693 = vsel %vm660, %v621, %v677
    %v694 = vsel %vm661, %v626, %v678
    %v695 = vsel %vm662, %v631, %v679
    %v696 = vsel %vm663, %v636, %v680
    %v697 = vsel %vm664, %v641, %v681
    %v698 = vsel %vm665, %v646, %v682
    %v699 = vld [vmem:[%s6] sm:$0x1]
    %v701 = vlaneseq
    %v702 = vshrl.u32 %v701, 7
    %v703 = vsub.s32 0, %v702
    %v704 = vrot.slane %v699, %v703
    %v706 = vmul.f32 %v683, %v704
    %v707 = vmul.f32 %v684, %v704
    %v708 = vmul.f32 %v685, %v704
    %v709 = vmul.f32 %v686, %v704
    %v710 = vmul.f32 %v687, %v704
    %v711 = vmul.f32 %v688, %v704
    %v712 = vmul.f32 %v689, %v704
    %v713 = vmul.f32 %v690, %v704
    %v714 = vmul.f32 %v691, %v704
    %v715 = vmul.f32 %v692, %v704
    %v716 = vmul.f32 %v693, %v704
    %v717 = vmul.f32 %v694, %v704
    %v718 = vmul.f32 %v695, %v704
    %v719 = vmul.f32 %v696, %v704
    %v720 = vmul.f32 %v697, %v704
    %v721 = vmul.f32 %v698, %v704
    %v722 = vld [vmem:[%s7] sm:$0x1]
    %v724 = vlaneseq
    %v725 = vshrl.u32 %v724, 7
    %v726 = vsub.s32 0, %v725
    %v727 = vrot.slane %v722, %v726
    %v729 = vadd.f32 %v706, %v727
    %v730 = vadd.f32 %v707, %v727
    %v731 = vadd.f32 %v708, %v727
    %v732 = vadd.f32 %v709, %v727
    %v733 = vadd.f32 %v710, %v727
    %v734 = vadd.f32 %v711, %v727
    %v735 = vadd.f32 %v712, %v727
    %v736 = vadd.f32 %v713, %v727
    %v737 = vadd.f32 %v714, %v727
    %v738 = vadd.f32 %v715, %v727
    %v739 = vadd.f32 %v716, %v727
    %v740 = vadd.f32 %v717, %v727
    %v741 = vadd.f32 %v718, %v727
    %v742 = vadd.f32 %v719, %v727
    %v743 = vadd.f32 %v720, %v727
    %v744 = vadd.f32 %v721, %v727
    %745 = vst [vmem:[%s9] sm:$0xff] %v729
    %746 = vst [vmem:[%s9 + $0x8] sm:$0xff] %v730
    %747 = vst [vmem:[%s9 + $0x10] sm:$0xff] %v731
    %748 = vst [vmem:[%s9 + $0x18] sm:$0xff] %v732
    %749 = vst [vmem:[%s9 + $0x20] sm:$0xff] %v733
    %750 = vst [vmem:[%s9 + $0x28] sm:$0xff] %v734
    %751 = vst [vmem:[%s9 + $0x30] sm:$0xff] %v735
    %752 = vst [vmem:[%s9 + $0x38] sm:$0xff] %v736
    %753 = vst [vmem:[%s9 + $0x40] sm:$0xff] %v737
    %754 = vst [vmem:[%s9 + $0x48] sm:$0xff] %v738
    %755 = vst [vmem:[%s9 + $0x50] sm:$0xff] %v739
    %756 = vst [vmem:[%s9 + $0x58] sm:$0xff] %v740
    %757 = vst [vmem:[%s9 + $0x60] sm:$0xff] %v741
    %758 = vst [vmem:[%s9 + $0x68] sm:$0xff] %v742
    %759 = vst [vmem:[%s9 + $0x70] sm:$0xff] %v743
    %760 = vst [vmem:[%s9 + $0x78] sm:$0xff] %v744
  $region45: #{run.4} parent=0 // pred_fallthru
    _
  // Predicated region
  $region46: #{run.4} parent=0 // pred_check
    _
  $region47: #{run.4} parent=0 // pred_check_branch
    %762 = sbr.rel (0) target = $region49
  $region48: #{run.4} parent=0 // pred_region
    _
  $region49: #{run.4} parent=0 // pred_fallthru
    _
  // Predicated region
  $region50: #{run.4} parent=0 // pred_check
    _
  $region51: #{run.4} parent=0 // pred_check_branch
    %764 = sbr.rel (0) target = $region53
  $region52: #{run.4} parent=0 // pred_region
    _
  $region53: #{run.4} parent=0 // pred_fallthru
    _

</llo_original>
